<compile_context>
chip_gen: v5e
topology: v5e:2x2
jax: 0.10.0
libtpu: 0.0.40
codegen_flags: <defaults>
</compile_context>

<pallas_src>
import functools
import math

import jax
import jax.numpy as jnp
from jax import lax
from jax.experimental import pallas as pl
from jax.experimental.pallas import tpu as pltpu

LN_EPS = 1e-5


def _layernorm(v, gamma, beta):
    mu = jnp.mean(v, axis=-1, keepdims=True)
    var = jnp.mean((v - mu) ** 2, axis=-1, keepdims=True)
    return (v - mu) * lax.rsqrt(var + LN_EPS) * gamma + beta


def _gelu_exact(v):
    # PyTorch nn.GELU() default: exact erf formulation.
    return 0.5 * v * (1.0 + lax.erf(v * (1.0 / math.sqrt(2.0))))


def encoder_kernel(n_heads,
                   x_ref,
                   g1_ref, b1_ref,
                   wqkv_ref, bqkv_ref,
                   wo_ref, bo_ref,
                   g2_ref, b2_ref,
                   w1_ref, bf1_ref,
                   w2_ref, bf2_ref,
                   o_ref):
    Bt, S, E = x_ref.shape
    M = Bt * S
    dh = E // n_heads
    scale = 1.0 / float(dh) ** 0.5
    bf16 = jnp.bfloat16

    x = x_ref[...].astype(jnp.float32).reshape(M, E)          # (M, E)

    # ---- sublayer 1: pre-LN multi-head self attention + residual ----
    h = _layernorm(x, g1_ref[...], b1_ref[...])

    # Fused Q|K|V projection: one (M, E) x (E, 3E) matmul, bf16 operands,
    # f32 accumulation.
    qkv = jnp.dot(h.astype(bf16), wqkv_ref[...],
                  preferred_element_type=jnp.float32) + bqkv_ref[...]
    q = qkv[:, 0 * E:1 * E].reshape(Bt, S, E)
    k = qkv[:, 1 * E:2 * E].reshape(Bt, S, E)
    v = qkv[:, 2 * E:3 * E].reshape(Bt, S, E)

    wo = wo_ref[...]                                          # (E, E) bf16
    attn = jnp.zeros((M, E), jnp.float32)
    for hd in range(n_heads):
        sl = slice(hd * dh, (hd + 1) * dh)
        qh = q[:, :, sl].astype(bf16)                         # (Bt, S, dh)
        kh = k[:, :, sl].astype(bf16)
        vh = v[:, :, sl].astype(bf16)

        # batched over the Bt batch elements: (Bt,S,dh)x(Bt,S,dh) -> (Bt,S,S)
        s = jnp.einsum("bqd,bkd->bqk", qh, kh,
                       preferred_element_type=jnp.float32) * scale
        s = s - jnp.max(s, axis=-1, keepdims=True)
        p = jnp.exp(s)
        p = p * pl.reciprocal(jnp.sum(p, axis=-1, keepdims=True), approx=True)

        ctx = jnp.einsum("bqk,bkd->bqd", p.astype(bf16), vh,
                         preferred_element_type=jnp.float32)  # (Bt, S, dh)

        # Fold this head directly into the output projection (no concatenate).
        attn = attn + jnp.dot(ctx.reshape(M, dh).astype(bf16), wo[sl, :],
                              preferred_element_type=jnp.float32)

    attn = attn + bo_ref[...]
    x1 = x + attn

    # ---- sublayer 2: pre-LN MLP (fc1 -> GELU -> fc2) + residual ----
    h2 = _layernorm(x1, g2_ref[...], b2_ref[...])
    f = jnp.dot(h2.astype(bf16), w1_ref[...],
                preferred_element_type=jnp.float32) + bf1_ref[...]
    f = _gelu_exact(f)
    f = jnp.dot(f.astype(bf16), w2_ref[...],
                preferred_element_type=jnp.float32) + bf2_ref[...]

    o_ref[...] = (x1 + f).reshape(Bt, S, E).astype(o_ref.dtype)


def _pick_block_b(B, S, target_m=256):
    """Largest divisor of B so block_b*S approaches the MXU height, while
    keeping >= 2 grid steps (megacore / dual-TC) when the batch allows."""
    bt = max(1, min(B, max(1, target_m // max(S, 1))))
    while B % bt != 0:
        bt -= 1
    if B // bt < 2 and B >= 2:
        bt = max(1, B // 2)
        while B % bt != 0:
            bt -= 1
    return bt


def encoder_forward(x, params, n_heads, block_b=None):
    """x: (B, S, E) float32.  params: dict of pre-transposed weights / biases."""
    B, S, E = x.shape
    H = params["w1"].shape[1]                      # hidden dim = E * forward_mul
    assert E % n_heads == 0
    if block_b is None:
        block_b = _pick_block_b(B, S)
    assert B % block_b == 0
    grid_b = B // block_b

    bf16 = jnp.bfloat16
    # Fused QKV weight/bias; weights pre-cast to bf16 (halves DMA + VMEM).
    wqkv = jnp.concatenate([params["wq"], params["wk"], params["wv"]],
                           axis=1).astype(bf16)
    bqkv = jnp.concatenate([params["bq"], params["bk"], params["bv"]], axis=1)
    wo = params["wo"].astype(bf16)
    w1 = params["w1"].astype(bf16)
    w2 = params["w2"].astype(bf16)

    def full_spec(shape):
        nd = len(shape)
        return pl.BlockSpec(shape, lambda b, _nd=nd: (0,) * _nd)

    in_specs = [
        pl.BlockSpec((block_b, S, E), lambda b: (b, 0, 0)),   # x
        full_spec((1, E)), full_spec((1, E)),                 # ln1 gamma/beta
        full_spec((E, 3 * E)), full_spec((1, 3 * E)),         # Wqkv, bqkv
        full_spec((E, E)), full_spec((1, E)),                 # Wo, bo
        full_spec((1, E)), full_spec((1, E)),                 # ln2 gamma/beta
        full_spec((E, H)), full_spec((1, H)),                 # W1, b1
        full_spec((H, E)), full_spec((1, E)),                 # W2, b2
    ]
    # NOTE: for large (ViT-Base) configs, add pipeline_mode=pl.Buffered(1) on
    # the constant-index weight specs and/or tile the MLP weights to fit the
    # 64 MiB v7x VMEM; unnecessary at these sizes.

    flops = (2 * B * S * E * 3 * E          # fused QKV projection
             + 2 * B * S * S * E * 2        # scores + ctx (all heads)
             + 2 * B * S * E * E            # output projection
             + 2 * B * S * E * H * 2)       # fc1 + fc2
    transcendentals = B * n_heads * S * S + B * S * H          # exp + erf
    bytes_accessed = (2 * B * S * E * 4                              # x in/out
                      + (E * 3 * E + E * E + E * H + H * E) * 2      # bf16 weights
                      + (3 * E + 6 * E + H) * 4)                     # biases / LN

    kernel = functools.partial(encoder_kernel, n_heads)

    return pl.pallas_call(
        kernel,
        out_shape=jax.ShapeDtypeStruct((B, S, E), x.dtype),
        grid_spec=pltpu.PrefetchScalarGridSpec(
            num_scalar_prefetch=0,
            grid=(grid_b,),
            in_specs=in_specs,
            out_specs=pl.BlockSpec((block_b, S, E), lambda b: (b, 0, 0)),
        ),
        compiler_params=pltpu.CompilerParams(
            dimension_semantics=("parallel",),
            vmem_limit_bytes=56 * 1024 * 1024),
        cost_estimate=pl.CostEstimate(
            flops=int(flops),
            transcendentals=int(transcendentals),
            bytes_accessed=int(bytes_accessed)),
    )(x,
      params["g1"], params["b1"],
      wqkv, bqkv,
      wo, params["bo"],
      params["g2"], params["b2"],
      w1, params["bf1"],
      w2, params["bf2"])


def encoder_reference(x, params, n_heads):
    """Pure-JAX reference with the same bf16-operand / f32-accumulate matmul
    precision as the kernel (for validation)."""
    B, S, E = x.shape
    dh = E // n_heads
    scale = 1.0 / float(dh) ** 0.5
    bf16 = jnp.bfloat16

    def mm(a, w):
        return jnp.dot(a.astype(bf16), w.astype(bf16),
                       preferred_element_type=jnp.float32)

    h = _layernorm(x, params["g1"], params["b1"])
    q = mm(h, params["wq"]) + params["bq"]
    k = mm(h, params["wk"]) + params["bk"]
    v = mm(h, params["wv"]) + params["bv"]

    def split_heads(t):
        return t.reshape(B, S, n_heads, dh).transpose(0, 2, 1, 3)   # (B,Hn,S,dh)

    qh, kh, vh = split_heads(q), split_heads(k), split_heads(v)
    scores = jnp.einsum("bhqd,bhkd->bhqk", qh.astype(bf16), kh.astype(bf16),
                        preferred_element_type=jnp.float32) * scale
    p = jax.nn.softmax(scores, axis=-1)
    ctx = jnp.einsum("bhqk,bhkd->bhqd", p.astype(bf16), vh.astype(bf16),
                     preferred_element_type=jnp.float32)
    ctx = ctx.transpose(0, 2, 1, 3).reshape(B, S, E)
    attn = mm(ctx, params["wo"]) + params["bo"]
    x1 = x + attn

    h2 = _layernorm(x1, params["g2"], params["b2"])
    f = _gelu_exact(mm(h2, params["w1"]) + params["bf1"])
    f = mm(f, params["w2"]) + params["bf2"]
    return x1 + f


def init_params(key, embed_dim, forward_mul):
    E = embed_dim
    H = embed_dim * forward_mul
    ks = jax.random.split(key, 12)
    s = 0.05

    def w(k, shape):
        return (s * jax.random.normal(k, shape)).astype(jnp.float32)

    return {
        "g1": jnp.ones((1, E), jnp.float32),
        "b1": jnp.zeros((1, E), jnp.float32),
        "wq": w(ks[0], (E, E)), "bq": w(ks[1], (1, E)),
        "wk": w(ks[2], (E, E)), "bk": w(ks[3], (1, E)),
        "wv": w(ks[4], (E, E)), "bv": w(ks[5], (1, E)),
        "wo": w(ks[6], (E, E)), "bo": w(ks[7], (1, E)),
        "g2": jnp.ones((1, E), jnp.float32),
        "b2": jnp.zeros((1, E), jnp.float32),
        "w1": w(ks[8], (E, H)), "bf1": w(ks[9], (1, H)),
        "w2": w(ks[10], (H, E)), "bf2": w(ks[11], (1, E)),
    }


if __name__ == "__main__":
    B, S, E = 4, 8, 32
    n_heads = 4
    forward_mul = 4

    key = jax.random.PRNGKey(0)
    kx, kp = jax.random.split(key)
    x = jax.random.normal(kx, (B, S, E), dtype=jnp.float32)
    params = init_params(kp, E, forward_mul)

    out = encoder_forward(x, params, n_heads)
    out = jax.block_until_ready(out)

    ref = encoder_reference(x, params, n_heads)
    assert out.shape == (B, S, E)
    max_err = float(jnp.max(jnp.abs(out - ref)))
    assert jnp.allclose(out, ref, rtol=1e-2, atol=1e-2), \
        f"mismatch vs reference (max abs err {max_err})"

    print("KERNEL_OK")
</pallas_src>

<mosaic_0001>
module attributes {stable_mosaic.version = 11 : i64} {
  func.func @encoder_kernel(%arg0: i32, %arg1: memref<2x8x32xf32, #tpu.memory_space<vmem>>, %arg2: memref<1x32xf32, #tpu.memory_space<vmem>>, %arg3: memref<1x32xf32, #tpu.memory_space<vmem>>, %arg4: memref<32x96xbf16, #tpu.memory_space<vmem>>, %arg5: memref<1x96xf32, #tpu.memory_space<vmem>>, %arg6: memref<32x32xbf16, #tpu.memory_space<vmem>>, %arg7: memref<1x32xf32, #tpu.memory_space<vmem>>, %arg8: memref<1x32xf32, #tpu.memory_space<vmem>>, %arg9: memref<1x32xf32, #tpu.memory_space<vmem>>, %arg10: memref<32x128xbf16, #tpu.memory_space<vmem>>, %arg11: memref<1x128xf32, #tpu.memory_space<vmem>>, %arg12: memref<128x32xbf16, #tpu.memory_space<vmem>>, %arg13: memref<1x32xf32, #tpu.memory_space<vmem>>, %arg14: memref<2x8x32xf32, #tpu.memory_space<vmem>>) attributes {dimension_semantics = [#tpu.dimension_semantics<parallel>], iteration_bounds = array<i64: 2>, scalar_prefetch = 0 : i64, scratch_operands = 0 : i64, tpu.core_type = #tpu.core_type<tc>, window_params = [{transform_indices = @transform_0, window_bounds = array<i64: 2, 8, 32>}, {pipeline_mode = #tpu.pipeline_mode<synchronous>, transform_indices = @transform_1, window_bounds = array<i64: 1, 32>}, {pipeline_mode = #tpu.pipeline_mode<synchronous>, transform_indices = @transform_2, window_bounds = array<i64: 1, 32>}, {pipeline_mode = #tpu.pipeline_mode<synchronous>, transform_indices = @transform_3, window_bounds = array<i64: 32, 96>}, {pipeline_mode = #tpu.pipeline_mode<synchronous>, transform_indices = @transform_4, window_bounds = array<i64: 1, 96>}, {pipeline_mode = #tpu.pipeline_mode<synchronous>, transform_indices = @transform_5, window_bounds = array<i64: 32, 32>}, {pipeline_mode = #tpu.pipeline_mode<synchronous>, transform_indices = @transform_6, window_bounds = array<i64: 1, 32>}, {pipeline_mode = #tpu.pipeline_mode<synchronous>, transform_indices = @transform_7, window_bounds = array<i64: 1, 32>}, {pipeline_mode = #tpu.pipeline_mode<synchronous>, transform_indices = @transform_8, window_bounds = array<i64: 1, 32>}, {pipeline_mode = #tpu.pipeline_mode<synchronous>, transform_indices = @transform_9, window_bounds = array<i64: 32, 128>}, {pipeline_mode = #tpu.pipeline_mode<synchronous>, transform_indices = @transform_10, window_bounds = array<i64: 1, 128>}, {pipeline_mode = #tpu.pipeline_mode<synchronous>, transform_indices = @transform_11, window_bounds = array<i64: 128, 32>}, {pipeline_mode = #tpu.pipeline_mode<synchronous>, transform_indices = @transform_12, window_bounds = array<i64: 1, 32>}, {transform_indices = @transform_13, window_bounds = array<i64: 2, 8, 32>}]} {
    %c0 = arith.constant 0 : index
    %c0_0 = arith.constant 0 : index
    %c0_1 = arith.constant 0 : index
    %0 = vector.load %arg1[%c0, %c0_0, %c0_1] : memref<2x8x32xf32, #tpu.memory_space<vmem>>, vector<2x8x32xf32>
    %1 = vector.shape_cast %0 : vector<2x8x32xf32> to vector<16x32xf32>
    %c0_2 = arith.constant 0 : index
    %c0_3 = arith.constant 0 : index
    %2 = vector.load %arg2[%c0_2, %c0_3] : memref<1x32xf32, #tpu.memory_space<vmem>>, vector<1x32xf32>
    %c0_4 = arith.constant 0 : index
    %c0_5 = arith.constant 0 : index
    %3 = vector.load %arg3[%c0_4, %c0_5] : memref<1x32xf32, #tpu.memory_space<vmem>>, vector<1x32xf32>
    %cst = arith.constant dense<0.000000e+00> : vector<16xf32>
    %4 = vector.multi_reduction <add>, %1, %cst [1] : vector<16x32xf32> to vector<16xf32>
    %5 = vector.shape_cast %4 : vector<16xf32> to vector<16x1xf32>
    %cst_6 = arith.constant 3.200000e+01 : f32
    %6 = vector.broadcast %cst_6 : f32 to vector<16x1xf32>
    %7 = arith.divf %5, %6 : vector<16x1xf32>
    %8 = vector.broadcast %7 : vector<16x1xf32> to vector<16x32xf32>
    %9 = arith.subf %1, %8 : vector<16x32xf32>
    %10 = arith.mulf %9, %9 : vector<16x32xf32>
    %cst_7 = arith.constant dense<0.000000e+00> : vector<16xf32>
    %11 = vector.multi_reduction <add>, %10, %cst_7 [1] : vector<16x32xf32> to vector<16xf32>
    %12 = vector.shape_cast %11 : vector<16xf32> to vector<16x1xf32>
    %cst_8 = arith.constant 3.200000e+01 : f32
    %13 = vector.broadcast %cst_8 : f32 to vector<16x1xf32>
    %14 = arith.divf %12, %13 : vector<16x1xf32>
    %15 = vector.broadcast %7 : vector<16x1xf32> to vector<16x32xf32>
    %16 = arith.subf %1, %15 : vector<16x32xf32>
    %cst_9 = arith.constant 9.99999974E-6 : f32
    %17 = vector.broadcast %cst_9 : f32 to vector<16x1xf32>
    %18 = arith.addf %14, %17 : vector<16x1xf32>
    %19 = math.rsqrt %18 : vector<16x1xf32>
    %20 = vector.broadcast %19 : vector<16x1xf32> to vector<16x32xf32>
    %21 = arith.mulf %16, %20 : vector<16x32xf32>
    %22 = vector.broadcast %2 : vector<1x32xf32> to vector<16x32xf32>
    %23 = arith.mulf %21, %22 : vector<16x32xf32>
    %24 = vector.broadcast %3 : vector<1x32xf32> to vector<16x32xf32>
    %25 = arith.addf %23, %24 : vector<16x32xf32>
    %26 = arith.truncf %25 : vector<16x32xf32> to vector<16x32xbf16>
    %c0_10 = arith.constant 0 : index
    %c0_11 = arith.constant 0 : index
    %27 = vector.load %arg4[%c0_10, %c0_11] : memref<32x96xbf16, #tpu.memory_space<vmem>>, vector<32x96xbf16>
    %cst_12 = arith.constant dense<0.000000e+00> : vector<16x96xf32>
    %28 = tpu.matmul %26, %27, %cst_12 {dimension_numbers = #tpu.dot_dimension_numbers<[1], [0], [0], [1], [0, 0, 1, 1], [], []>} : vector<16x32xbf16>, vector<32x96xbf16>, vector<16x96xf32> -> vector<16x96xf32>
    %c0_13 = arith.constant 0 : index
    %c0_14 = arith.constant 0 : index
    %29 = vector.load %arg5[%c0_13, %c0_14] : memref<1x96xf32, #tpu.memory_space<vmem>>, vector<1x96xf32>
    %30 = vector.broadcast %29 : vector<1x96xf32> to vector<16x96xf32>
    %31 = arith.addf %28, %30 : vector<16x96xf32>
    %32 = vector.extract_strided_slice %31 {offsets = [0, 0], sizes = [16, 32], strides = [1, 1]} : vector<16x96xf32> to vector<16x32xf32>
    %33 = vector.shape_cast %32 : vector<16x32xf32> to vector<2x8x32xf32>
    %34 = vector.extract_strided_slice %31 {offsets = [0, 32], sizes = [16, 32], strides = [1, 1]} : vector<16x96xf32> to vector<16x32xf32>
    %35 = vector.shape_cast %34 : vector<16x32xf32> to vector<2x8x32xf32>
    %36 = vector.extract_strided_slice %31 {offsets = [0, 64], sizes = [16, 32], strides = [1, 1]} : vector<16x96xf32> to vector<16x32xf32>
    %37 = vector.shape_cast %36 : vector<16x32xf32> to vector<2x8x32xf32>
    %c0_15 = arith.constant 0 : index
    %c0_16 = arith.constant 0 : index
    %38 = vector.load %arg6[%c0_15, %c0_16] : memref<32x32xbf16, #tpu.memory_space<vmem>>, vector<32x32xbf16>
    %cst_17 = arith.constant 0.000000e+00 : f32
    %39 = vector.broadcast %cst_17 : f32 to vector<16x32xf32>
    %40 = vector.extract_strided_slice %33 {offsets = [0, 0, 0], sizes = [2, 8, 8], strides = [1, 1, 1]} : vector<2x8x32xf32> to vector<2x8x8xf32>
    %41 = arith.truncf %40 : vector<2x8x8xf32> to vector<2x8x8xbf16>
    %42 = vector.extract_strided_slice %35 {offsets = [0, 0, 0], sizes = [2, 8, 8], strides = [1, 1, 1]} : vector<2x8x32xf32> to vector<2x8x8xf32>
    %43 = arith.truncf %42 : vector<2x8x8xf32> to vector<2x8x8xbf16>
    %44 = vector.extract_strided_slice %37 {offsets = [0, 0, 0], sizes = [2, 8, 8], strides = [1, 1, 1]} : vector<2x8x32xf32> to vector<2x8x8xf32>
    %45 = arith.truncf %44 : vector<2x8x8xf32> to vector<2x8x8xbf16>
    "tpu.trace_start"() <{level = 10 : i32, message = "bqd,bkd->bqk"}> : () -> ()
    %cst_18 = arith.constant dense<0.000000e+00> : vector<2x8x8xf32>
    %46 = tpu.matmul %41, %43, %cst_18 {dimension_numbers = #tpu.dot_dimension_numbers<[2], [2], [1], [1], [0, 0, 0, 1, 1, 1], [0], [0]>} : vector<2x8x8xbf16>, vector<2x8x8xbf16>, vector<2x8x8xf32> -> vector<2x8x8xf32>
    "tpu.trace_stop"() : () -> ()
    %cst_19 = arith.constant 0.353553385 : f32
    %47 = vector.broadcast %cst_19 : f32 to vector<2x8x8xf32>
    %48 = arith.mulf %46, %47 : vector<2x8x8xf32>
    %cst_20 = arith.constant dense<0xFF800000> : vector<2x8xf32>
    %49 = vector.multi_reduction <maximumf>, %48, %cst_20 [2] : vector<2x8x8xf32> to vector<2x8xf32>
    %50 = vector.shape_cast %49 : vector<2x8xf32> to vector<2x8x1xf32>
    %51 = vector.broadcast %50 : vector<2x8x1xf32> to vector<2x8x8xf32>
    %52 = arith.subf %48, %51 : vector<2x8x8xf32>
    %53 = math.exp %52 : vector<2x8x8xf32>
    %cst_21 = arith.constant dense<0.000000e+00> : vector<2x8xf32>
    %54 = vector.multi_reduction <add>, %53, %cst_21 [2] : vector<2x8x8xf32> to vector<2x8xf32>
    %55 = vector.shape_cast %54 : vector<2x8xf32> to vector<2x8x1xf32>
    %56 = tpu.reciprocal %55 {approx = true} : vector<2x8x1xf32> -> vector<2x8x1xf32>
    %57 = vector.broadcast %56 : vector<2x8x1xf32> to vector<2x8x8xf32>
    %58 = arith.mulf %53, %57 : vector<2x8x8xf32>
    %59 = arith.truncf %58 : vector<2x8x8xf32> to vector<2x8x8xbf16>
    "tpu.trace_start"() <{level = 10 : i32, message = "bqk,bkd->bqd"}> : () -> ()
    %cst_22 = arith.constant dense<0.000000e+00> : vector<2x8x8xf32>
    %60 = tpu.matmul %59, %45, %cst_22 {dimension_numbers = #tpu.dot_dimension_numbers<[2], [1], [1], [2], [0, 0, 0, 1, 1, 2], [0], [0]>} : vector<2x8x8xbf16>, vector<2x8x8xbf16>, vector<2x8x8xf32> -> vector<2x8x8xf32>
    "tpu.trace_stop"() : () -> ()
    %61 = vector.shape_cast %60 : vector<2x8x8xf32> to vector<16x8xf32>
    %62 = arith.truncf %61 : vector<16x8xf32> to vector<16x8xbf16>
    %63 = vector.extract_strided_slice %38 {offsets = [0, 0], sizes = [8, 32], strides = [1, 1]} : vector<32x32xbf16> to vector<8x32xbf16>
    %cst_23 = arith.constant dense<0.000000e+00> : vector<16x32xf32>
    %64 = tpu.matmul %62, %63, %cst_23 {dimension_numbers = #tpu.dot_dimension_numbers<[1], [0], [0], [1], [0, 0, 1, 1], [], []>} : vector<16x8xbf16>, vector<8x32xbf16>, vector<16x32xf32> -> vector<16x32xf32>
    %65 = arith.addf %39, %64 : vector<16x32xf32>
    %66 = vector.extract_strided_slice %33 {offsets = [0, 0, 8], sizes = [2, 8, 8], strides = [1, 1, 1]} : vector<2x8x32xf32> to vector<2x8x8xf32>
    %67 = arith.truncf %66 : vector<2x8x8xf32> to vector<2x8x8xbf16>
    %68 = vector.extract_strided_slice %35 {offsets = [0, 0, 8], sizes = [2, 8, 8], strides = [1, 1, 1]} : vector<2x8x32xf32> to vector<2x8x8xf32>
    %69 = arith.truncf %68 : vector<2x8x8xf32> to vector<2x8x8xbf16>
    %70 = vector.extract_strided_slice %37 {offsets = [0, 0, 8], sizes = [2, 8, 8], strides = [1, 1, 1]} : vector<2x8x32xf32> to vector<2x8x8xf32>
    %71 = arith.truncf %70 : vector<2x8x8xf32> to vector<2x8x8xbf16>
    "tpu.trace_start"() <{level = 10 : i32, message = "bqd,bkd->bqk"}> : () -> ()
    %cst_24 = arith.constant dense<0.000000e+00> : vector<2x8x8xf32>
    %72 = tpu.matmul %67, %69, %cst_24 {dimension_numbers = #tpu.dot_dimension_numbers<[2], [2], [1], [1], [0, 0, 0, 1, 1, 1], [0], [0]>} : vector<2x8x8xbf16>, vector<2x8x8xbf16>, vector<2x8x8xf32> -> vector<2x8x8xf32>
    "tpu.trace_stop"() : () -> ()
    %cst_25 = arith.constant 0.353553385 : f32
    %73 = vector.broadcast %cst_25 : f32 to vector<2x8x8xf32>
    %74 = arith.mulf %72, %73 : vector<2x8x8xf32>
    %cst_26 = arith.constant dense<0xFF800000> : vector<2x8xf32>
    %75 = vector.multi_reduction <maximumf>, %74, %cst_26 [2] : vector<2x8x8xf32> to vector<2x8xf32>
    %76 = vector.shape_cast %75 : vector<2x8xf32> to vector<2x8x1xf32>
    %77 = vector.broadcast %76 : vector<2x8x1xf32> to vector<2x8x8xf32>
    %78 = arith.subf %74, %77 : vector<2x8x8xf32>
    %79 = math.exp %78 : vector<2x8x8xf32>
    %cst_27 = arith.constant dense<0.000000e+00> : vector<2x8xf32>
    %80 = vector.multi_reduction <add>, %79, %cst_27 [2] : vector<2x8x8xf32> to vector<2x8xf32>
    %81 = vector.shape_cast %80 : vector<2x8xf32> to vector<2x8x1xf32>
    %82 = tpu.reciprocal %81 {approx = true} : vector<2x8x1xf32> -> vector<2x8x1xf32>
    %83 = vector.broadcast %82 : vector<2x8x1xf32> to vector<2x8x8xf32>
    %84 = arith.mulf %79, %83 : vector<2x8x8xf32>
    %85 = arith.truncf %84 : vector<2x8x8xf32> to vector<2x8x8xbf16>
    "tpu.trace_start"() <{level = 10 : i32, message = "bqk,bkd->bqd"}> : () -> ()
    %cst_28 = arith.constant dense<0.000000e+00> : vector<2x8x8xf32>
    %86 = tpu.matmul %85, %71, %cst_28 {dimension_numbers = #tpu.dot_dimension_numbers<[2], [1], [1], [2], [0, 0, 0, 1, 1, 2], [0], [0]>} : vector<2x8x8xbf16>, vector<2x8x8xbf16>, vector<2x8x8xf32> -> vector<2x8x8xf32>
    "tpu.trace_stop"() : () -> ()
    %87 = vector.shape_cast %86 : vector<2x8x8xf32> to vector<16x8xf32>
    %88 = arith.truncf %87 : vector<16x8xf32> to vector<16x8xbf16>
    %89 = vector.extract_strided_slice %38 {offsets = [8, 0], sizes = [8, 32], strides = [1, 1]} : vector<32x32xbf16> to vector<8x32xbf16>
    %cst_29 = arith.constant dense<0.000000e+00> : vector<16x32xf32>
    %90 = tpu.matmul %88, %89, %cst_29 {dimension_numbers = #tpu.dot_dimension_numbers<[1], [0], [0], [1], [0, 0, 1, 1], [], []>} : vector<16x8xbf16>, vector<8x32xbf16>, vector<16x32xf32> -> vector<16x32xf32>
    %91 = arith.addf %65, %90 : vector<16x32xf32>
    %92 = vector.extract_strided_slice %33 {offsets = [0, 0, 16], sizes = [2, 8, 8], strides = [1, 1, 1]} : vector<2x8x32xf32> to vector<2x8x8xf32>
    %93 = arith.truncf %92 : vector<2x8x8xf32> to vector<2x8x8xbf16>
    %94 = vector.extract_strided_slice %35 {offsets = [0, 0, 16], sizes = [2, 8, 8], strides = [1, 1, 1]} : vector<2x8x32xf32> to vector<2x8x8xf32>
    %95 = arith.truncf %94 : vector<2x8x8xf32> to vector<2x8x8xbf16>
    %96 = vector.extract_strided_slice %37 {offsets = [0, 0, 16], sizes = [2, 8, 8], strides = [1, 1, 1]} : vector<2x8x32xf32> to vector<2x8x8xf32>
    %97 = arith.truncf %96 : vector<2x8x8xf32> to vector<2x8x8xbf16>
    "tpu.trace_start"() <{level = 10 : i32, message = "bqd,bkd->bqk"}> : () -> ()
    %cst_30 = arith.constant dense<0.000000e+00> : vector<2x8x8xf32>
    %98 = tpu.matmul %93, %95, %cst_30 {dimension_numbers = #tpu.dot_dimension_numbers<[2], [2], [1], [1], [0, 0, 0, 1, 1, 1], [0], [0]>} : vector<2x8x8xbf16>, vector<2x8x8xbf16>, vector<2x8x8xf32> -> vector<2x8x8xf32>
    "tpu.trace_stop"() : () -> ()
    %cst_31 = arith.constant 0.353553385 : f32
    %99 = vector.broadcast %cst_31 : f32 to vector<2x8x8xf32>
    %100 = arith.mulf %98, %99 : vector<2x8x8xf32>
    %cst_32 = arith.constant dense<0xFF800000> : vector<2x8xf32>
    %101 = vector.multi_reduction <maximumf>, %100, %cst_32 [2] : vector<2x8x8xf32> to vector<2x8xf32>
    %102 = vector.shape_cast %101 : vector<2x8xf32> to vector<2x8x1xf32>
    %103 = vector.broadcast %102 : vector<2x8x1xf32> to vector<2x8x8xf32>
    %104 = arith.subf %100, %103 : vector<2x8x8xf32>
    %105 = math.exp %104 : vector<2x8x8xf32>
    %cst_33 = arith.constant dense<0.000000e+00> : vector<2x8xf32>
    %106 = vector.multi_reduction <add>, %105, %cst_33 [2] : vector<2x8x8xf32> to vector<2x8xf32>
    %107 = vector.shape_cast %106 : vector<2x8xf32> to vector<2x8x1xf32>
    %108 = tpu.reciprocal %107 {approx = true} : vector<2x8x1xf32> -> vector<2x8x1xf32>
    %109 = vector.broadcast %108 : vector<2x8x1xf32> to vector<2x8x8xf32>
    %110 = arith.mulf %105, %109 : vector<2x8x8xf32>
    %111 = arith.truncf %110 : vector<2x8x8xf32> to vector<2x8x8xbf16>
    "tpu.trace_start"() <{level = 10 : i32, message = "bqk,bkd->bqd"}> : () -> ()
    %cst_34 = arith.constant dense<0.000000e+00> : vector<2x8x8xf32>
    %112 = tpu.matmul %111, %97, %cst_34 {dimension_numbers = #tpu.dot_dimension_numbers<[2], [1], [1], [2], [0, 0, 0, 1, 1, 2], [0], [0]>} : vector<2x8x8xbf16>, vector<2x8x8xbf16>, vector<2x8x8xf32> -> vector<2x8x8xf32>
    "tpu.trace_stop"() : () -> ()
    %113 = vector.shape_cast %112 : vector<2x8x8xf32> to vector<16x8xf32>
    %114 = arith.truncf %113 : vector<16x8xf32> to vector<16x8xbf16>
    %115 = vector.extract_strided_slice %38 {offsets = [16, 0], sizes = [8, 32], strides = [1, 1]} : vector<32x32xbf16> to vector<8x32xbf16>
    %cst_35 = arith.constant dense<0.000000e+00> : vector<16x32xf32>
    %116 = tpu.matmul %114, %115, %cst_35 {dimension_numbers = #tpu.dot_dimension_numbers<[1], [0], [0], [1], [0, 0, 1, 1], [], []>} : vector<16x8xbf16>, vector<8x32xbf16>, vector<16x32xf32> -> vector<16x32xf32>
    %117 = arith.addf %91, %116 : vector<16x32xf32>
    %118 = vector.extract_strided_slice %33 {offsets = [0, 0, 24], sizes = [2, 8, 8], strides = [1, 1, 1]} : vector<2x8x32xf32> to vector<2x8x8xf32>
    %119 = arith.truncf %118 : vector<2x8x8xf32> to vector<2x8x8xbf16>
    %120 = vector.extract_strided_slice %35 {offsets = [0, 0, 24], sizes = [2, 8, 8], strides = [1, 1, 1]} : vector<2x8x32xf32> to vector<2x8x8xf32>
    %121 = arith.truncf %120 : vector<2x8x8xf32> to vector<2x8x8xbf16>
    %122 = vector.extract_strided_slice %37 {offsets = [0, 0, 24], sizes = [2, 8, 8], strides = [1, 1, 1]} : vector<2x8x32xf32> to vector<2x8x8xf32>
    %123 = arith.truncf %122 : vector<2x8x8xf32> to vector<2x8x8xbf16>
    "tpu.trace_start"() <{level = 10 : i32, message = "bqd,bkd->bqk"}> : () -> ()
    %cst_36 = arith.constant dense<0.000000e+00> : vector<2x8x8xf32>
    %124 = tpu.matmul %119, %121, %cst_36 {dimension_numbers = #tpu.dot_dimension_numbers<[2], [2], [1], [1], [0, 0, 0, 1, 1, 1], [0], [0]>} : vector<2x8x8xbf16>, vector<2x8x8xbf16>, vector<2x8x8xf32> -> vector<2x8x8xf32>
    "tpu.trace_stop"() : () -> ()
    %cst_37 = arith.constant 0.353553385 : f32
    %125 = vector.broadcast %cst_37 : f32 to vector<2x8x8xf32>
    %126 = arith.mulf %124, %125 : vector<2x8x8xf32>
    %cst_38 = arith.constant dense<0xFF800000> : vector<2x8xf32>
    %127 = vector.multi_reduction <maximumf>, %126, %cst_38 [2] : vector<2x8x8xf32> to vector<2x8xf32>
    %128 = vector.shape_cast %127 : vector<2x8xf32> to vector<2x8x1xf32>
    %129 = vector.broadcast %128 : vector<2x8x1xf32> to vector<2x8x8xf32>
    %130 = arith.subf %126, %129 : vector<2x8x8xf32>
    %131 = math.exp %130 : vector<2x8x8xf32>
    %cst_39 = arith.constant dense<0.000000e+00> : vector<2x8xf32>
    %132 = vector.multi_reduction <add>, %131, %cst_39 [2] : vector<2x8x8xf32> to vector<2x8xf32>
    %133 = vector.shape_cast %132 : vector<2x8xf32> to vector<2x8x1xf32>
    %134 = tpu.reciprocal %133 {approx = true} : vector<2x8x1xf32> -> vector<2x8x1xf32>
    %135 = vector.broadcast %134 : vector<2x8x1xf32> to vector<2x8x8xf32>
    %136 = arith.mulf %131, %135 : vector<2x8x8xf32>
    %137 = arith.truncf %136 : vector<2x8x8xf32> to vector<2x8x8xbf16>
    "tpu.trace_start"() <{level = 10 : i32, message = "bqk,bkd->bqd"}> : () -> ()
    %cst_40 = arith.constant dense<0.000000e+00> : vector<2x8x8xf32>
    %138 = tpu.matmul %137, %123, %cst_40 {dimension_numbers = #tpu.dot_dimension_numbers<[2], [1], [1], [2], [0, 0, 0, 1, 1, 2], [0], [0]>} : vector<2x8x8xbf16>, vector<2x8x8xbf16>, vector<2x8x8xf32> -> vector<2x8x8xf32>
    "tpu.trace_stop"() : () -> ()
    %139 = vector.shape_cast %138 : vector<2x8x8xf32> to vector<16x8xf32>
    %140 = arith.truncf %139 : vector<16x8xf32> to vector<16x8xbf16>
    %141 = vector.extract_strided_slice %38 {offsets = [24, 0], sizes = [8, 32], strides = [1, 1]} : vector<32x32xbf16> to vector<8x32xbf16>
    %cst_41 = arith.constant dense<0.000000e+00> : vector<16x32xf32>
    %142 = tpu.matmul %140, %141, %cst_41 {dimension_numbers = #tpu.dot_dimension_numbers<[1], [0], [0], [1], [0, 0, 1, 1], [], []>} : vector<16x8xbf16>, vector<8x32xbf16>, vector<16x32xf32> -> vector<16x32xf32>
    %143 = arith.addf %117, %142 : vector<16x32xf32>
    %c0_42 = arith.constant 0 : index
    %c0_43 = arith.constant 0 : index
    %144 = vector.load %arg7[%c0_42, %c0_43] : memref<1x32xf32, #tpu.memory_space<vmem>>, vector<1x32xf32>
    %145 = vector.broadcast %144 : vector<1x32xf32> to vector<16x32xf32>
    %146 = arith.addf %143, %145 : vector<16x32xf32>
    %147 = arith.addf %1, %146 : vector<16x32xf32>
    %c0_44 = arith.constant 0 : index
    %c0_45 = arith.constant 0 : index
    %148 = vector.load %arg8[%c0_44, %c0_45] : memref<1x32xf32, #tpu.memory_space<vmem>>, vector<1x32xf32>
    %c0_46 = arith.constant 0 : index
    %c0_47 = arith.constant 0 : index
    %149 = vector.load %arg9[%c0_46, %c0_47] : memref<1x32xf32, #tpu.memory_space<vmem>>, vector<1x32xf32>
    %cst_48 = arith.constant dense<0.000000e+00> : vector<16xf32>
    %150 = vector.multi_reduction <add>, %147, %cst_48 [1] : vector<16x32xf32> to vector<16xf32>
    %151 = vector.shape_cast %150 : vector<16xf32> to vector<16x1xf32>
    %cst_49 = arith.constant 3.200000e+01 : f32
    %152 = vector.broadcast %cst_49 : f32 to vector<16x1xf32>
    %153 = arith.divf %151, %152 : vector<16x1xf32>
    %154 = vector.broadcast %153 : vector<16x1xf32> to vector<16x32xf32>
    %155 = arith.subf %147, %154 : vector<16x32xf32>
    %156 = arith.mulf %155, %155 : vector<16x32xf32>
    %cst_50 = arith.constant dense<0.000000e+00> : vector<16xf32>
    %157 = vector.multi_reduction <add>, %156, %cst_50 [1] : vector<16x32xf32> to vector<16xf32>
    %158 = vector.shape_cast %157 : vector<16xf32> to vector<16x1xf32>
    %cst_51 = arith.constant 3.200000e+01 : f32
    %159 = vector.broadcast %cst_51 : f32 to vector<16x1xf32>
    %160 = arith.divf %158, %159 : vector<16x1xf32>
    %161 = vector.broadcast %153 : vector<16x1xf32> to vector<16x32xf32>
    %162 = arith.subf %147, %161 : vector<16x32xf32>
    %cst_52 = arith.constant 9.99999974E-6 : f32
    %163 = vector.broadcast %cst_52 : f32 to vector<16x1xf32>
    %164 = arith.addf %160, %163 : vector<16x1xf32>
    %165 = math.rsqrt %164 : vector<16x1xf32>
    %166 = vector.broadcast %165 : vector<16x1xf32> to vector<16x32xf32>
    %167 = arith.mulf %162, %166 : vector<16x32xf32>
    %168 = vector.broadcast %148 : vector<1x32xf32> to vector<16x32xf32>
    %169 = arith.mulf %167, %168 : vector<16x32xf32>
    %170 = vector.broadcast %149 : vector<1x32xf32> to vector<16x32xf32>
    %171 = arith.addf %169, %170 : vector<16x32xf32>
    %172 = arith.truncf %171 : vector<16x32xf32> to vector<16x32xbf16>
    %c0_53 = arith.constant 0 : index
    %c0_54 = arith.constant 0 : index
    %173 = vector.load %arg10[%c0_53, %c0_54] : memref<32x128xbf16, #tpu.memory_space<vmem>>, vector<32x128xbf16>
    %cst_55 = arith.constant dense<0.000000e+00> : vector<16x128xf32>
    %174 = tpu.matmul %172, %173, %cst_55 {dimension_numbers = #tpu.dot_dimension_numbers<[1], [0], [0], [1], [0, 0, 1, 1], [], []>} : vector<16x32xbf16>, vector<32x128xbf16>, vector<16x128xf32> -> vector<16x128xf32>
    %c0_56 = arith.constant 0 : index
    %c0_57 = arith.constant 0 : index
    %175 = vector.load %arg11[%c0_56, %c0_57] : memref<1x128xf32, #tpu.memory_space<vmem>>, vector<1x128xf32>
    %176 = vector.broadcast %175 : vector<1x128xf32> to vector<16x128xf32>
    %177 = arith.addf %174, %176 : vector<16x128xf32>
    %cst_58 = arith.constant 5.000000e-01 : f32
    %178 = vector.broadcast %cst_58 : f32 to vector<16x128xf32>
    %179 = arith.mulf %178, %177 : vector<16x128xf32>
    %cst_59 = arith.constant 0.707106769 : f32
    %180 = vector.broadcast %cst_59 : f32 to vector<16x128xf32>
    %181 = arith.mulf %177, %180 : vector<16x128xf32>
    %182 = math.erf %181 : vector<16x128xf32>
    %cst_60 = arith.constant 1.000000e+00 : f32
    %183 = vector.broadcast %cst_60 : f32 to vector<16x128xf32>
    %184 = arith.addf %183, %182 : vector<16x128xf32>
    %185 = arith.mulf %179, %184 : vector<16x128xf32>
    %186 = arith.truncf %185 : vector<16x128xf32> to vector<16x128xbf16>
    %c0_61 = arith.constant 0 : index
    %c0_62 = arith.constant 0 : index
    %187 = vector.load %arg12[%c0_61, %c0_62] : memref<128x32xbf16, #tpu.memory_space<vmem>>, vector<128x32xbf16>
    %cst_63 = arith.constant dense<0.000000e+00> : vector<16x32xf32>
    %188 = tpu.matmul %186, %187, %cst_63 {dimension_numbers = #tpu.dot_dimension_numbers<[1], [0], [0], [1], [0, 0, 1, 1], [], []>} : vector<16x128xbf16>, vector<128x32xbf16>, vector<16x32xf32> -> vector<16x32xf32>
    %c0_64 = arith.constant 0 : index
    %c0_65 = arith.constant 0 : index
    %189 = vector.load %arg13[%c0_64, %c0_65] : memref<1x32xf32, #tpu.memory_space<vmem>>, vector<1x32xf32>
    %190 = vector.broadcast %189 : vector<1x32xf32> to vector<16x32xf32>
    %191 = arith.addf %188, %190 : vector<16x32xf32>
    %192 = arith.addf %147, %191 : vector<16x32xf32>
    %193 = vector.shape_cast %192 : vector<16x32xf32> to vector<2x8x32xf32>
    %c0_66 = arith.constant 0 : index
    %c0_67 = arith.constant 0 : index
    %c0_68 = arith.constant 0 : index
    %194 = vector.load %arg14[%c0_66, %c0_67, %c0_68] : memref<2x8x32xf32, #tpu.memory_space<vmem>>, vector<2x8x32xf32>
    tpu.vector_store %arg14[%c0_66, %c0_67, %c0_68], %193 {strides = array<i32>} : memref<2x8x32xf32, #tpu.memory_space<vmem>>, vector<2x8x32xf32>,
    return
  }
  func.func @transform_0(%arg0: i32) -> (i32, i32, i32) {
    %c0_i32 = arith.constant 0 : i32
    %c0_i32_0 = arith.constant 0 : i32
    %c0_i32_1 = arith.constant 0 : i32
    return %arg0, %c0_i32, %c0_i32_0 : i32, i32, i32
  }
  func.func @transform_1(%arg0: i32) -> (i32, i32) {
    %c0_i32 = arith.constant 0 : i32
    %c0_i32_0 = arith.constant 0 : i32
    %c0_i32_1 = arith.constant 0 : i32
    return %c0_i32, %c0_i32_0 : i32, i32
  }
  func.func @transform_2(%arg0: i32) -> (i32, i32) {
    %c0_i32 = arith.constant 0 : i32
    %c0_i32_0 = arith.constant 0 : i32
    %c0_i32_1 = arith.constant 0 : i32
    return %c0_i32, %c0_i32_0 : i32, i32
  }
  func.func @transform_3(%arg0: i32) -> (i32, i32) {
    %c0_i32 = arith.constant 0 : i32
    %c0_i32_0 = arith.constant 0 : i32
    %c0_i32_1 = arith.constant 0 : i32
    return %c0_i32, %c0_i32_0 : i32, i32
  }
  func.func @transform_4(%arg0: i32) -> (i32, i32) {
    %c0_i32 = arith.constant 0 : i32
    %c0_i32_0 = arith.constant 0 : i32
    %c0_i32_1 = arith.constant 0 : i32
    return %c0_i32, %c0_i32_0 : i32, i32
  }
  func.func @transform_5(%arg0: i32) -> (i32, i32) {
    %c0_i32 = arith.constant 0 : i32
    %c0_i32_0 = arith.constant 0 : i32
    %c0_i32_1 = arith.constant 0 : i32
    return %c0_i32, %c0_i32_0 : i32, i32
  }
  func.func @transform_6(%arg0: i32) -> (i32, i32) {
    %c0_i32 = arith.constant 0 : i32
    %c0_i32_0 = arith.constant 0 : i32
    %c0_i32_1 = arith.constant 0 : i32
    return %c0_i32, %c0_i32_0 : i32, i32
  }
  func.func @transform_7(%arg0: i32) -> (i32, i32) {
    %c0_i32 = arith.constant 0 : i32
    %c0_i32_0 = arith.constant 0 : i32
    %c0_i32_1 = arith.constant 0 : i32
    return %c0_i32, %c0_i32_0 : i32, i32
  }
  func.func @transform_8(%arg0: i32) -> (i32, i32) {
    %c0_i32 = arith.constant 0 : i32
    %c0_i32_0 = arith.constant 0 : i32
    %c0_i32_1 = arith.constant 0 : i32
    return %c0_i32, %c0_i32_0 : i32, i32
  }
  func.func @transform_9(%arg0: i32) -> (i32, i32) {
    %c0_i32 = arith.constant 0 : i32
    %c0_i32_0 = arith.constant 0 : i32
    %c0_i32_1 = arith.constant 0 : i32
    return %c0_i32, %c0_i32_0 : i32, i32
  }
  func.func @transform_10(%arg0: i32) -> (i32, i32) {
    %c0_i32 = arith.constant 0 : i32
    %c0_i32_0 = arith.constant 0 : i32
    %c0_i32_1 = arith.constant 0 : i32
    return %c0_i32, %c0_i32_0 : i32, i32
  }
  func.func @transform_11(%arg0: i32) -> (i32, i32) {
    %c0_i32 = arith.constant 0 : i32
    %c0_i32_0 = arith.constant 0 : i32
    %c0_i32_1 = arith.constant 0 : i32
    return %c0_i32, %c0_i32_0 : i32, i32
  }
  func.func @transform_12(%arg0: i32) -> (i32, i32) {
    %c0_i32 = arith.constant 0 : i32
    %c0_i32_0 = arith.constant 0 : i32
    %c0_i32_1 = arith.constant 0 : i32
    return %c0_i32, %c0_i32_0 : i32, i32
  }
  func.func @transform_13(%arg0: i32) -> (i32, i32, i32) {
    %c0_i32 = arith.constant 0 : i32
    %c0_i32_0 = arith.constant 0 : i32
    %c0_i32_1 = arith.constant 0 : i32
    return %arg0, %c0_i32, %c0_i32_0 : i32, i32, i32
  }
}

</mosaic_0001>

<llo_original>
// kernel: tpu_custom_call.1
$region0: #{tpu_custom_call.1}
  #allocation0 [shape = 'u32[]', space=smem, size = 0x4, offset = 0x4, fixed_abs, tag = 'smem constant byte address 0x4 - core index']
  #allocation1 [shape = 'u32[72,128]{1,0:T(1,128)}', space=vmem, size = 0x9000, scoped, tag = 'internal scratch']
  %s0 = inlined_call_operand.vmem [shape: f32[4,8,32], index: 0, kind: input, shape index: {}]
  %s1 = inlined_call_operand.hbm [shape: f32[1,32], index: 1, kind: input, shape index: {}]
  %s2 = inlined_call_operand.vmem [shape: f32[1,32], index: 2, kind: input, shape index: {}]
  %s3 = inlined_call_operand.vmem [shape: bf16[32,96], index: 3, kind: input, shape index: {}]
  %s4 = inlined_call_operand.vmem [shape: f32[1,96], index: 4, kind: input, shape index: {}]
  %s5 = inlined_call_operand.vmem [shape: bf16[32,32], index: 5, kind: input, shape index: {}]
  %s6 = inlined_call_operand.vmem [shape: f32[1,32], index: 6, kind: input, shape index: {}]
  %s7 = inlined_call_operand.vmem [shape: f32[1,32], index: 7, kind: input, shape index: {}]
  %s8 = inlined_call_operand.vmem [shape: f32[1,32], index: 8, kind: input, shape index: {}]
  %s9 = inlined_call_operand.vmem [shape: bf16[32,128], index: 9, kind: input, shape index: {}]
  %s10 = inlined_call_operand.vmem [shape: f32[1,128], index: 10, kind: input, shape index: {}]
  %s11 = inlined_call_operand.vmem [shape: bf16[128,32], index: 11, kind: input, shape index: {}]
  %s12 = inlined_call_operand.vmem [shape: f32[1,32], index: 12, kind: input, shape index: {}]
  %s13 = inlined_call_operand.hbm [shape: f32[4,8,32], index: 13, kind: output, shape index: {}]
  %s14 = sld [smem:[#allocation0]]
  $region89: #{tpu_custom_call.1} parent=0
    _
  %s16 = ssub.s32 1, %s14
  %s17 = scalar_select 0, %s16, %s14
  $region1: #{tpu_custom_call.1} parent=0
    #allocation2 [shape = 'u8[512]{0}', space=vmem, size = 0x400, scoped, tag = 'input window, operand 1, single buffered']
    #allocation3 [shape = 's32[2]{0}', space=sflag, size = 0x8, scoped, tag = 'scoped memory for tpu_custom_call.1']
    #allocation4 [shape = 's32[2]{0}', space=sflag, size = 0x8, scoped, tag = 'scoped memory for tpu_custom_call.1']
    #allocation5 [shape = 'u8[16384]{0}', space=vmem, size = 0x4000, scoped, tag = 'output window, operand 0']
    %18 = vsyncpa [#allocation3], 0
    %19 = vsyncpa [#allocation4], 0
    %s20 = scalar_lea.sflag [#allocation4], 1
    %21 = vsyncpa %s20, 0
    loop: start=0, step=1, limit=4
    $region2: #{tpu_custom_call.1} parent=1 // loop_pre_header
      _
    $region3: #{tpu_custom_call.1} parent=1 // loop_header
      %s23 = sphi 0, %s27
      %p24 = scmp.ge.s32.totalorder %s23, 4
      %s33 = sphi 0, %s35
      %s36 = sphi 0, %s33
      %s37 = sphi 0, %s36
      %s53 = sphi 0, %s37
      %s57 = sphi 0, %s57
      %s59 = sphi 0, %s57
      %s60 = sphi 0, %s59
      %s74 = sphi 0, %s60
      %s78 = sphi 0, %s78
      %s80 = sphi 0, %s78
      %s81 = sphi 0, %s80
      %s95 = sphi 0, %s81
      %s99 = sphi 0, %s99
      %s101 = sphi 0, %s99
      %s102 = sphi 0, %s101
      %s116 = sphi 0, %s102
      %s120 = sphi 0, %s120
      %s122 = sphi 0, %s120
      %s123 = sphi 0, %s122
      %s137 = sphi 0, %s123
      %s141 = sphi 0, %s141
      %s143 = sphi 0, %s141
      %s144 = sphi 0, %s143
      %s158 = sphi 0, %s144
      %s162 = sphi 0, %s162
      %s164 = sphi 0, %s162
      %s165 = sphi 0, %s164
      %s179 = sphi 0, %s165
      %s183 = sphi 0, %s183
      %s185 = sphi 0, %s183
      %s186 = sphi 0, %s185
      %s200 = sphi 0, %s186
      %s204 = sphi 0, %s204
      %s206 = sphi 0, %s204
      %s207 = sphi 0, %s206
      %s221 = sphi 0, %s207
      %s225 = sphi 0, %s225
      %s227 = sphi 0, %s225
      %s228 = sphi 0, %s227
      %s242 = sphi 0, %s228
      %s246 = sphi 0, %s246
      %s248 = sphi 0, %s246
      %s249 = sphi 0, %s248
      %s263 = sphi 0, %s249
      %s267 = sphi 0, %s267
      %s269 = sphi 0, %s267
      %s270 = sphi 0, %s269
      %s284 = sphi 0, %s270
      %s288 = sphi 0, %s288
      %s290 = sphi 0, %s288
      %s291 = sphi 0, %s290
      %s305 = sphi 0, %s291
      %s311 = sphi 0, %s313
      %s314 = sphi 0, %s311
      %s315 = sphi 0, %s314
      %s331 = sphi 0, %s315
    $region4: #{tpu_custom_call.1} parent=1 // loop_header_branch
      %26 = sbr.rel (%p24) target = $region8
    $region5: #{tpu_custom_call.1} parent=1 // loop_body
      %s28 = ssub.s32 %s23, 1
      %s29 = ssub.s32 %s23, 2
      %s30 = sadd.s32 %s23, 1
      %s31 = ssub.s32 %s23, %s30
      %p32 = scmp.eq.s32.totalorder %s31, 0
      %s34 = sadd.s32 %s33, 1
      %s35 = scalar_select %p32, %s33, %s34
      %p38 = pneg %p32
      %p39 = scmp.eq.s32.totalorder %s23, 1
      %p40 = por %p38, %p39
      %p41 = scmp.ne.s32.totalorder %s33, %s36
      %p42 = scmp.eq.s32.totalorder %s23, 0
      %p43 = por %p41, %p42
      %p44 = scmp.ne.s32.totalorder %s33, %s36
      %p45 = scmp.eq.s32.totalorder %s28, 1
      %p46 = por %p44, %p45
      %p47 = scmp.ne.s32.totalorder %s36, %s37
      %p48 = scmp.eq.s32.totalorder %s28, 0
      %p49 = por %p47, %p48
      %p50 = scmp.ne.s32.totalorder %s36, %s37
      %p51 = scmp.eq.s32.totalorder %s29, 1
      %p52 = por %p50, %p51
      %p54 = scmp.ne.s32.totalorder %s37, %s53
      %p55 = scmp.eq.s32.totalorder %s29, 0
      %p56 = por %p54, %p55
      %s58 = sadd.s32 %s57, 1
      %p61 = scmp.eq.s32.totalorder %s23, 1
      %p62 = scmp.ne.s32.totalorder %s57, %s59
      %p63 = scmp.eq.s32.totalorder %s23, 0
      %p64 = por %p62, %p63
      %p65 = scmp.ne.s32.totalorder %s57, %s59
      %p66 = scmp.eq.s32.totalorder %s28, 1
      %p67 = por %p65, %p66
      %p68 = scmp.ne.s32.totalorder %s59, %s60
      %p69 = scmp.eq.s32.totalorder %s28, 0
      %p70 = por %p68, %p69
      %p71 = scmp.ne.s32.totalorder %s59, %s60
      %p72 = scmp.eq.s32.totalorder %s29, 1
      %p73 = por %p71, %p72
      %p75 = scmp.ne.s32.totalorder %s60, %s74
      %p76 = scmp.eq.s32.totalorder %s29, 0
      %p77 = por %p75, %p76
      %s79 = sadd.s32 %s78, 1
      %p82 = scmp.eq.s32.totalorder %s23, 1
      %p83 = scmp.ne.s32.totalorder %s78, %s80
      %p84 = scmp.eq.s32.totalorder %s23, 0
      %p85 = por %p83, %p84
      %p86 = scmp.ne.s32.totalorder %s78, %s80
      %p87 = scmp.eq.s32.totalorder %s28, 1
      %p88 = por %p86, %p87
      %p89 = scmp.ne.s32.totalorder %s80, %s81
      %p90 = scmp.eq.s32.totalorder %s28, 0
      %p91 = por %p89, %p90
      %p92 = scmp.ne.s32.totalorder %s80, %s81
      %p93 = scmp.eq.s32.totalorder %s29, 1
      %p94 = por %p92, %p93
      %p96 = scmp.ne.s32.totalorder %s81, %s95
      %p97 = scmp.eq.s32.totalorder %s29, 0
      %p98 = por %p96, %p97
      %s100 = sadd.s32 %s99, 1
      %p103 = scmp.eq.s32.totalorder %s23, 1
      %p104 = scmp.ne.s32.totalorder %s99, %s101
      %p105 = scmp.eq.s32.totalorder %s23, 0
      %p106 = por %p104, %p105
      %p107 = scmp.ne.s32.totalorder %s99, %s101
      %p108 = scmp.eq.s32.totalorder %s28, 1
      %p109 = por %p107, %p108
      %p110 = scmp.ne.s32.totalorder %s101, %s102
      %p111 = scmp.eq.s32.totalorder %s28, 0
      %p112 = por %p110, %p111
      %p113 = scmp.ne.s32.totalorder %s101, %s102
      %p114 = scmp.eq.s32.totalorder %s29, 1
      %p115 = por %p113, %p114
      %p117 = scmp.ne.s32.totalorder %s102, %s116
      %p118 = scmp.eq.s32.totalorder %s29, 0
      %p119 = por %p117, %p118
      %s121 = sadd.s32 %s120, 1
      %p124 = scmp.eq.s32.totalorder %s23, 1
      %p125 = scmp.ne.s32.totalorder %s120, %s122
      %p126 = scmp.eq.s32.totalorder %s23, 0
      %p127 = por %p125, %p126
      %p128 = scmp.ne.s32.totalorder %s120, %s122
      %p129 = scmp.eq.s32.totalorder %s28, 1
      %p130 = por %p128, %p129
      %p131 = scmp.ne.s32.totalorder %s122, %s123
      %p132 = scmp.eq.s32.totalorder %s28, 0
      %p133 = por %p131, %p132
      %p134 = scmp.ne.s32.totalorder %s122, %s123
      %p135 = scmp.eq.s32.totalorder %s29, 1
      %p136 = por %p134, %p135
      %p138 = scmp.ne.s32.totalorder %s123, %s137
      %p139 = scmp.eq.s32.totalorder %s29, 0
      %p140 = por %p138, %p139
      %s142 = sadd.s32 %s141, 1
      %p145 = scmp.eq.s32.totalorder %s23, 1
      %p146 = scmp.ne.s32.totalorder %s141, %s143
      %p147 = scmp.eq.s32.totalorder %s23, 0
      %p148 = por %p146, %p147
      %p149 = scmp.ne.s32.totalorder %s141, %s143
      %p150 = scmp.eq.s32.totalorder %s28, 1
      %p151 = por %p149, %p150
      %p152 = scmp.ne.s32.totalorder %s143, %s144
      %p153 = scmp.eq.s32.totalorder %s28, 0
      %p154 = por %p152, %p153
      %p155 = scmp.ne.s32.totalorder %s143, %s144
      %p156 = scmp.eq.s32.totalorder %s29, 1
      %p157 = por %p155, %p156
      %p159 = scmp.ne.s32.totalorder %s144, %s158
      %p160 = scmp.eq.s32.totalorder %s29, 0
      %p161 = por %p159, %p160
      %s163 = sadd.s32 %s162, 1
      %p166 = scmp.eq.s32.totalorder %s23, 1
      %p167 = scmp.ne.s32.totalorder %s162, %s164
      %p168 = scmp.eq.s32.totalorder %s23, 0
      %p169 = por %p167, %p168
      %p170 = scmp.ne.s32.totalorder %s162, %s164
      %p171 = scmp.eq.s32.totalorder %s28, 1
      %p172 = por %p170, %p171
      %p173 = scmp.ne.s32.totalorder %s164, %s165
      %p174 = scmp.eq.s32.totalorder %s28, 0
      %p175 = por %p173, %p174
      %p176 = scmp.ne.s32.totalorder %s164, %s165
      %p177 = scmp.eq.s32.totalorder %s29, 1
      %p178 = por %p176, %p177
      %p180 = scmp.ne.s32.totalorder %s165, %s179
      %p181 = scmp.eq.s32.totalorder %s29, 0
      %p182 = por %p180, %p181
      %s184 = sadd.s32 %s183, 1
      %p187 = scmp.eq.s32.totalorder %s23, 1
      %p188 = scmp.ne.s32.totalorder %s183, %s185
      %p189 = scmp.eq.s32.totalorder %s23, 0
      %p190 = por %p188, %p189
      %p191 = scmp.ne.s32.totalorder %s183, %s185
      %p192 = scmp.eq.s32.totalorder %s28, 1
      %p193 = por %p191, %p192
      %p194 = scmp.ne.s32.totalorder %s185, %s186
      %p195 = scmp.eq.s32.totalorder %s28, 0
      %p196 = por %p194, %p195
      %p197 = scmp.ne.s32.totalorder %s185, %s186
      %p198 = scmp.eq.s32.totalorder %s29, 1
      %p199 = por %p197, %p198
      %p201 = scmp.ne.s32.totalorder %s186, %s200
      %p202 = scmp.eq.s32.totalorder %s29, 0
      %p203 = por %p201, %p202
      %s205 = sadd.s32 %s204, 1
      %p208 = scmp.eq.s32.totalorder %s23, 1
      %p209 = scmp.ne.s32.totalorder %s204, %s206
      %p210 = scmp.eq.s32.totalorder %s23, 0
      %p211 = por %p209, %p210
      %p212 = scmp.ne.s32.totalorder %s204, %s206
      %p213 = scmp.eq.s32.totalorder %s28, 1
      %p214 = por %p212, %p213
      %p215 = scmp.ne.s32.totalorder %s206, %s207
      %p216 = scmp.eq.s32.totalorder %s28, 0
      %p217 = por %p215, %p216
      %p218 = scmp.ne.s32.totalorder %s206, %s207
      %p219 = scmp.eq.s32.totalorder %s29, 1
      %p220 = por %p218, %p219
      %p222 = scmp.ne.s32.totalorder %s207, %s221
      %p223 = scmp.eq.s32.totalorder %s29, 0
      %p224 = por %p222, %p223
      %s226 = sadd.s32 %s225, 1
      %p229 = scmp.eq.s32.totalorder %s23, 1
      %p230 = scmp.ne.s32.totalorder %s225, %s227
      %p231 = scmp.eq.s32.totalorder %s23, 0
      %p232 = por %p230, %p231
      %p233 = scmp.ne.s32.totalorder %s225, %s227
      %p234 = scmp.eq.s32.totalorder %s28, 1
      %p235 = por %p233, %p234
      %p236 = scmp.ne.s32.totalorder %s227, %s228
      %p237 = scmp.eq.s32.totalorder %s28, 0
      %p238 = por %p236, %p237
      %p239 = scmp.ne.s32.totalorder %s227, %s228
      %p240 = scmp.eq.s32.totalorder %s29, 1
      %p241 = por %p239, %p240
      %p243 = scmp.ne.s32.totalorder %s228, %s242
      %p244 = scmp.eq.s32.totalorder %s29, 0
      %p245 = por %p243, %p244
      %s247 = sadd.s32 %s246, 1
      %p250 = scmp.eq.s32.totalorder %s23, 1
      %p251 = scmp.ne.s32.totalorder %s246, %s248
      %p252 = scmp.eq.s32.totalorder %s23, 0
      %p253 = por %p251, %p252
      %p254 = scmp.ne.s32.totalorder %s246, %s248
      %p255 = scmp.eq.s32.totalorder %s28, 1
      %p256 = por %p254, %p255
      %p257 = scmp.ne.s32.totalorder %s248, %s249
      %p258 = scmp.eq.s32.totalorder %s28, 0
      %p259 = por %p257, %p258
      %p260 = scmp.ne.s32.totalorder %s248, %s249
      %p261 = scmp.eq.s32.totalorder %s29, 1
      %p262 = por %p260, %p261
      %p264 = scmp.ne.s32.totalorder %s249, %s263
      %p265 = scmp.eq.s32.totalorder %s29, 0
      %p266 = por %p264, %p265
      %s268 = sadd.s32 %s267, 1
      %p271 = scmp.eq.s32.totalorder %s23, 1
      %p272 = scmp.ne.s32.totalorder %s267, %s269
      %p273 = scmp.eq.s32.totalorder %s23, 0
      %p274 = por %p272, %p273
      %p275 = scmp.ne.s32.totalorder %s267, %s269
      %p276 = scmp.eq.s32.totalorder %s28, 1
      %p277 = por %p275, %p276
      %p278 = scmp.ne.s32.totalorder %s269, %s270
      %p279 = scmp.eq.s32.totalorder %s28, 0
      %p280 = por %p278, %p279
      %p281 = scmp.ne.s32.totalorder %s269, %s270
      %p282 = scmp.eq.s32.totalorder %s29, 1
      %p283 = por %p281, %p282
      %p285 = scmp.ne.s32.totalorder %s270, %s284
      %p286 = scmp.eq.s32.totalorder %s29, 0
      %p287 = por %p285, %p286
      %s289 = sadd.s32 %s288, 1
      %p292 = scmp.eq.s32.totalorder %s23, 1
      %p293 = scmp.ne.s32.totalorder %s288, %s290
      %p294 = scmp.eq.s32.totalorder %s23, 0
      %p295 = por %p293, %p294
      %p296 = scmp.ne.s32.totalorder %s288, %s290
      %p297 = scmp.eq.s32.totalorder %s28, 1
      %p298 = por %p296, %p297
      %p299 = scmp.ne.s32.totalorder %s290, %s291
      %p300 = scmp.eq.s32.totalorder %s28, 0
      %p301 = por %p299, %p300
      %p302 = scmp.ne.s32.totalorder %s290, %s291
      %p303 = scmp.eq.s32.totalorder %s29, 1
      %p304 = por %p302, %p303
      %p306 = scmp.ne.s32.totalorder %s291, %s305
      %p307 = scmp.eq.s32.totalorder %s29, 0
      %p308 = por %p306, %p307
      %s309 = ssub.s32 %s23, %s30
      %p310 = scmp.eq.s32.totalorder %s309, 0
      %s312 = sadd.s32 %s311, 1
      %s313 = scalar_select %p310, %s311, %s312
      %p316 = pneg %p310
      %p317 = scmp.eq.s32.totalorder %s23, 1
      %p318 = por %p316, %p317
      %p319 = scmp.ne.s32.totalorder %s311, %s314
      %p320 = scmp.eq.s32.totalorder %s23, 0
      %p321 = por %p319, %p320
      %p322 = scmp.ne.s32.totalorder %s311, %s314
      %p323 = scmp.eq.s32.totalorder %s28, 1
      %p324 = por %p322, %p323
      %p325 = scmp.ne.s32.totalorder %s314, %s315
      %p326 = scmp.eq.s32.totalorder %s28, 0
      %p327 = por %p325, %p326
      %p328 = scmp.ne.s32.totalorder %s314, %s315
      %p329 = scmp.eq.s32.totalorder %s29, 1
      %p330 = por %p328, %p329
      %p332 = scmp.ne.s32.totalorder %s315, %s331
      %p333 = scmp.eq.s32.totalorder %s29, 0
      %p334 = por %p332, %p333
      %p335 = scmp.le.s32.totalorder 1, %s23
      %p336 = scmp.lt.s32.totalorder %s23, 3
      %p337 = pnand %p335, %p336
      %p338 = pneg %p337
      // Predicated region
      $region9: #{tpu_custom_call.1} parent=5 // pred_check
        _
      $region10: #{tpu_custom_call.1} parent=5 // pred_check_branch
        %340 = sbr.rel (%p337) target = $region12
      $region11: #{tpu_custom_call.1} parent=5 // pred_region
        %s341 = ssub.s32 %s23, 1
        // Predicated region
        $region13: #{tpu_custom_call.1} parent=11 // pred_check
          %p342 = pneg %p70
        $region14: #{tpu_custom_call.1} parent=11 // pred_check_branch
          %344 = sbr.rel (%p342) target = $region16
        $region15: #{tpu_custom_call.1} parent=11 // pred_region
          %346 = vsyncadd [#allocation3], 0
          %s348 = sshll.u32 %s1, 4
          %s349 = int_to_ptr.hbm [resolvable:$true] %s348
          %s350 = sshll.u32 [#allocation2], 4
          %s351 = int_to_ptr.vmem [resolvable:$true] %s350
          %353 = dma.hbm_to_vmem [thread:$0]  %s349, 16, %s351, [#allocation3]
        $region16: #{tpu_custom_call.1} parent=11 // pred_fallthru
          _
        // Predicated region
        $region17: #{tpu_custom_call.1} parent=11 // pred_check
          %p354 = pneg %p91
        $region18: #{tpu_custom_call.1} parent=11 // pred_check_branch
          %356 = sbr.rel (%p354) target = $region20
        $region19: #{tpu_custom_call.1} parent=11 // pred_region
          _
        $region20: #{tpu_custom_call.1} parent=11 // pred_fallthru
          _
        // Predicated region
        $region21: #{tpu_custom_call.1} parent=11 // pred_check
          %p357 = pneg %p112
        $region22: #{tpu_custom_call.1} parent=11 // pred_check_branch
          %359 = sbr.rel (%p357) target = $region24
        $region23: #{tpu_custom_call.1} parent=11 // pred_region
          _
        $region24: #{tpu_custom_call.1} parent=11 // pred_fallthru
          _
        // Predicated region
        $region25: #{tpu_custom_call.1} parent=11 // pred_check
          %p360 = pneg %p133
        $region26: #{tpu_custom_call.1} parent=11 // pred_check_branch
          %362 = sbr.rel (%p360) target = $region28
        $region27: #{tpu_custom_call.1} parent=11 // pred_region
          _
        $region28: #{tpu_custom_call.1} parent=11 // pred_fallthru
          _
        // Predicated region
        $region29: #{tpu_custom_call.1} parent=11 // pred_check
          %p363 = pneg %p154
        $region30: #{tpu_custom_call.1} parent=11 // pred_check_branch
          %365 = sbr.rel (%p363) target = $region32
        $region31: #{tpu_custom_call.1} parent=11 // pred_region
          _
        $region32: #{tpu_custom_call.1} parent=11 // pred_fallthru
          _
        // Predicated region
        $region33: #{tpu_custom_call.1} parent=11 // pred_check
          %p366 = pneg %p175
        $region34: #{tpu_custom_call.1} parent=11 // pred_check_branch
          %368 = sbr.rel (%p366) target = $region36
        $region35: #{tpu_custom_call.1} parent=11 // pred_region
          _
        $region36: #{tpu_custom_call.1} parent=11 // pred_fallthru
          _
        // Predicated region
        $region37: #{tpu_custom_call.1} parent=11 // pred_check
          %p369 = pneg %p196
        $region38: #{tpu_custom_call.1} parent=11 // pred_check_branch
          %371 = sbr.rel (%p369) target = $region40
        $region39: #{tpu_custom_call.1} parent=11 // pred_region
          _
        $region40: #{tpu_custom_call.1} parent=11 // pred_fallthru
          _
        // Predicated region
        $region41: #{tpu_custom_call.1} parent=11 // pred_check
          %p372 = pneg %p217
        $region42: #{tpu_custom_call.1} parent=11 // pred_check_branch
          %374 = sbr.rel (%p372) target = $region44
        $region43: #{tpu_custom_call.1} parent=11 // pred_region
          _
        $region44: #{tpu_custom_call.1} parent=11 // pred_fallthru
          _
        // Predicated region
        $region45: #{tpu_custom_call.1} parent=11 // pred_check
          %p375 = pneg %p238
        $region46: #{tpu_custom_call.1} parent=11 // pred_check_branch
          %377 = sbr.rel (%p375) target = $region48
        $region47: #{tpu_custom_call.1} parent=11 // pred_region
          _
        $region48: #{tpu_custom_call.1} parent=11 // pred_fallthru
          _
        // Predicated region
        $region49: #{tpu_custom_call.1} parent=11 // pred_check
          %p378 = pneg %p259
        $region50: #{tpu_custom_call.1} parent=11 // pred_check_branch
          %380 = sbr.rel (%p378) target = $region52
        $region51: #{tpu_custom_call.1} parent=11 // pred_region
          _
        $region52: #{tpu_custom_call.1} parent=11 // pred_fallthru
          _
        // Predicated region
        $region53: #{tpu_custom_call.1} parent=11 // pred_check
          %p381 = pneg %p280
        $region54: #{tpu_custom_call.1} parent=11 // pred_check_branch
          %383 = sbr.rel (%p381) target = $region56
        $region55: #{tpu_custom_call.1} parent=11 // pred_region
          _
        $region56: #{tpu_custom_call.1} parent=11 // pred_fallthru
          _
        // Predicated region
        $region57: #{tpu_custom_call.1} parent=11 // pred_check
          %p384 = pneg %p301
        $region58: #{tpu_custom_call.1} parent=11 // pred_check_branch
          %386 = sbr.rel (%p384) target = $region60
        $region59: #{tpu_custom_call.1} parent=11 // pred_region
          _
        $region60: #{tpu_custom_call.1} parent=11 // pred_fallthru
          _
      $region12: #{tpu_custom_call.1} parent=5 // pred_fallthru
        _
      %p387 = scmp.lt.s32.totalorder %s23, 2
      // Predicated region
      $region61: #{tpu_custom_call.1} parent=5 // pred_check
        %p388 = pneg %p387
      $region62: #{tpu_custom_call.1} parent=5 // pred_check_branch
        %390 = sbr.rel (%p388) target = $region64
      $region63: #{tpu_custom_call.1} parent=5 // pred_region
        // Predicated region
        $region65: #{tpu_custom_call.1} parent=63 // pred_check
          %p391 = pneg %p43
        $region66: #{tpu_custom_call.1} parent=63 // pred_check_branch
          %393 = sbr.rel (%p391) target = $region68
        $region67: #{tpu_custom_call.1} parent=63 // pred_region
          %s394 = smul.u32 2, %s23
          %p395 = scmp.lt.s32.totalorder %s394, 3
          %s396 = scalar_select %p395, %s394, 3
          %s397 = smul.addr %s396, 8
          %s398 = scalar_lea.vmem %s0, %s397
          %s399 = smul.u32 2, %s23
        $region68: #{tpu_custom_call.1} parent=63 // pred_fallthru
          _
      $region64: #{tpu_custom_call.1} parent=5 // pred_fallthru
        _
      %p400 = scmp.le.s32.totalorder 1, %s23
      %p401 = scmp.lt.s32.totalorder %s23, 3
      %p402 = pnand %p400, %p401
      %p403 = pneg %p402
      // Predicated region
      $region69: #{tpu_custom_call.1} parent=5 // pred_check
        _
      $region70: #{tpu_custom_call.1} parent=5 // pred_check_branch
        %405 = sbr.rel (%p402) target = $region72
      $region71: #{tpu_custom_call.1} parent=5 // pred_region
        %s406 = ssub.s32 %s23, 1
        // Predicated region
        $region73: #{tpu_custom_call.1} parent=71 // pred_check
          %p407 = pneg %p70
        $region74: #{tpu_custom_call.1} parent=71 // pred_check_branch
          %409 = sbr.rel (%p407) target = $region76
        $region75: #{tpu_custom_call.1} parent=71 // pred_region
          %411 = dma.done [#allocation3], 16
        $region76: #{tpu_custom_call.1} parent=71 // pred_fallthru
          _
        %s412 = smul.u32 2, %s28
        %p413 = scmp.lt.s32.totalorder %s412, 3
        %s414 = scalar_select %p413, %s412, 3
        %s415 = smul.addr %s414, 8
        %s416 = scalar_lea.vmem %s0, %s415
        %p417 = pneg %p49
        %p418 = pneg %p46
        %p419 = pneg %p70
        %p420 = pneg %p67
        %p421 = pneg %p91
        %p422 = pneg %p88
        %p423 = pneg %p112
        %p424 = pneg %p109
        %p425 = pneg %p133
        %p426 = pneg %p130
        %p427 = pneg %p154
        %p428 = pneg %p151
        %p429 = pneg %p175
        %p430 = pneg %p172
        %p431 = pneg %p196
        %p432 = pneg %p193
        %p433 = pneg %p217
        %p434 = pneg %p214
        %p435 = pneg %p238
        %p436 = pneg %p235
        %p437 = pneg %p259
        %p438 = pneg %p256
        %p439 = pneg %p280
        %p440 = pneg %p277
        %p441 = pneg %p301
        %p442 = pneg %p298
        %p443 = pneg %p327
        %p444 = pneg %p324
        %s445 = sand.u32 %s314, 1
        %s446 = scalar_lea.sflag [#allocation4], %s445
        %s447 = sand.u32 %s314, 1
        %s448 = smul.addr %s447, 16
        %s449 = scalar_lea.vmem [#allocation5], %s448
        %s450 = smul.u32 2, %s28
        %p451 = scmp.lt.s32.totalorder %s450, 3
        %s452 = scalar_select %p451, %s450, 3
        %s453 = smul.addr %s452, 8
        %s454 = scalar_lea.vmem %s0, %s453
        %s455 = smul.u32 2, %s28
        %s456 = smul.u32 2, %s28
        %v458 = vld [vmem:[%s454] sm:$0xff]
        %v459 = vld [vmem:[%s454 + $0x8] sm:$0xff]
        %v460 = vld [vmem:[#allocation2] sm:$0x1]
        %v461 = vld [vmem:[%s2] sm:$0x1]
        %vm462 = vcmask 261120
        %v463 = vsel %vm462, %v458, 0.0
        %464 = vadd.xlane.f32.xlu0 %v463
        %v465 = vpop.xlane.xlu0 %464
        %v466 = vsel %vm462, %v459, 0.0
        %467 = vadd.xlane.f32.xlu0 %v466
        %v468 = vpop.xlane.xlu0 %467
        %v469 = vrcp.pop 32.0
        %v470 = vmul.f32 32.0, %v469
        %v471 = vsub.f32 1.0, %v470
        %v472 = vmul.f32 %v469, %v471
        %v473 = vadd.f32 %v469, %v472
        %vm474 = vweird.f32 %v469
        %v475 = vsel %vm474, %v469, %v473
        %v476 = vmul.f32 %v465, %v475
        %v477 = vmul.f32 %v468, %v475
        %v478 = vsub.f32 %v458, %v476
        %v479 = vsub.f32 %v459, %v477
        %v480 = vmul.f32 %v478, %v478
        %v481 = vmul.f32 %v479, %v479
        %v482 = vsel %vm462, %v480, 0.0
        %483 = vadd.xlane.f32.xlu0 %v482
        %v484 = vpop.xlane.xlu0 %483
        %v485 = vsel %vm462, %v481, 0.0
        %486 = vadd.xlane.f32.xlu0 %v485
        %v487 = vpop.xlane.xlu0 %486
        %v488 = vmul.f32 %v484, %v475
        %v489 = vmul.f32 %v487, %v475
        %v490 = vadd.f32 %v488, 1e-05
        %v491 = vadd.f32 %v489, 1e-05
        %v492 = vrsqrt.pop %v490
        %v493 = vmul.f32 %v492, %v490
        %v494 = vmul.f32 %v493, %v492
        %v495 = vmul.f32 0.5, %v494
        %v496 = vsub.f32 1.5, %v495
        %v497 = vmul.f32 %v492, %v496
        %vm498 = vweird.f32 %v490
        %vm499 = vweird.f32 %v492
        %vm500 = vmor %vm498, %vm499
        %v501 = vsel %vm500, %v492, %v497
        %v502 = vrsqrt.pop %v491
        %v503 = vmul.f32 %v502, %v491
        %v504 = vmul.f32 %v503, %v502
        %v505 = vmul.f32 0.5, %v504
        %v506 = vsub.f32 1.5, %v505
        %v507 = vmul.f32 %v502, %v506
        %vm508 = vweird.f32 %v491
        %vm509 = vweird.f32 %v502
        %vm510 = vmor %vm508, %vm509
        %v511 = vsel %vm510, %v502, %v507
        %v512 = vmul.f32 %v478, %v501
        %v513 = vmul.f32 %v479, %v511
        %v515 = vperm.slane %v460, 0
        %v517 = vmul.f32 %v512, %v515
        %v518 = vmul.f32 %v513, %v515
        %v520 = vperm.slane %v461, 0
        %v522 = vadd.f32 %v517, %v520
        %v523 = vadd.f32 %v518, %v520
        %v524 = vpack.c.bf16 %v523, %v522
        %v525 = vld [vmem:[%s3] sm:$0xf]
        %v526 = vld [vmem:[%s3 + $0x4] sm:$0xf]
        %v527 = vld [vmem:[%s3 + $0x8] sm:$0xf]
        %v528 = vld [vmem:[%s3 + $0xc] sm:$0xf]
        %v529 = vld [vmem:[%s4] sm:$0x1]
        %v531 = vperm.slane %v529, 0
        %v537 = vunpack.c.l.b16 %v525
        %v538 = vunpack.c.l.b16 %v526
        %v539 = vunpack.c.l.b16 %v527
        %v540 = vunpack.c.l.b16 %v528
        %v541 = vpack.c.b16 %v538, %v537
        %v542 = vpack.c.b16 %v540, %v539
        %v546 = vsel %vm462, %v524, 0
        %548 = vmatpush.bf16.msra.mxu0 0
        %549 = vmatpush.bf16.msra.mxu0 0
        %550 = vmatpush.bf16.msra.mxu0 0
        %551 = vmatpush.bf16.msra.mxu0 0
        %552 = vmatpush.bf16.msra.mxu0 0
        %553 = vmatpush.bf16.msra.mxu0 0
        %554 = vmatpush.bf16.msra.mxu0 %v542
        %555 = vmatpush.bf16.msra.mxu0 %v541
        %556 = vmatmul.bf16.gmra.mxu0 %v546
        %v557 = vpop.f32.mrf.mxu0
        %v558 = vadd.f32 %v531, %v557
        %v559 = vpop.f32.mrf.mxu0
        %v560 = vadd.f32 %v531, %v559
        %561 = vdwg.mxu0
        %v562 = vld [vmem:[%s5] sm:$0xf]
        %v563 = vld [vmem:[%s5 + $0x4] sm:$0xf]
        %v564 = vld [vmem:[%s5 + $0x8] sm:$0xf]
        %v565 = vld [vmem:[%s5 + $0xc] sm:$0xf]
        %v566 = vpack.c.bf16 %v558, %v558
        %v567 = vpack.c.bf16 %v560, %v560
        %v569 = vunpack.c.l.b16 %v566
        %v570 = vpack.c.b16 %v569, %v569
        %571 = vrot.lane.b32.xlu0 %v570, 96
        %v572 = vpop.permute.xlu0 %571
        %vm573 = vcmask 64512
        %v575 = vsel %vm573, %v566, 0
        %v578 = vsel %vm573, %v572, 0
        %580 = vmatpush.bf16.xpose.msra.mxu0 0
        %581 = vmatpush.bf16.xpose.msra.mxu0 0
        %582 = vmatpush.bf16.xpose.msra.mxu0 0
        %583 = vmatpush.bf16.xpose.msra.mxu0 0
        %584 = vmatpush.bf16.xpose.msra.mxu0 0
        %585 = vmatpush.bf16.xpose.msra.mxu0 0
        %586 = vmatpush.bf16.xpose.msra.mxu0 0
        %587 = vmatpush.bf16.xpose.msra.mxu0 %v578
        %588 = vmatmul.bf16.gmra.mxu0 %v575
        %v589 = vpop.f32.mrf.mxu0
        %v590 = vadd.f32 0.0, %v589
        %v591 = vpop.f32.mrf.mxu0
        %592 = vdwg.mxu0
        %v594 = vunpack.c.l.b16 %v567
        %v595 = vpack.c.b16 %v594, %v594
        %596 = vrot.lane.b32.xlu0 %v595, 96
        %v597 = vpop.permute.xlu0 %596
        %v599 = vsel %vm573, %v567, 0
        %v602 = vsel %vm573, %v597, 0
        %604 = vmatpush.bf16.xpose.msra.mxu0 0
        %605 = vmatpush.bf16.xpose.msra.mxu0 0
        %606 = vmatpush.bf16.xpose.msra.mxu0 0
        %607 = vmatpush.bf16.xpose.msra.mxu0 0
        %608 = vmatpush.bf16.xpose.msra.mxu0 0
        %609 = vmatpush.bf16.xpose.msra.mxu0 0
        %610 = vmatpush.bf16.xpose.msra.mxu0 0
        %611 = vmatpush.bf16.xpose.msra.mxu0 %v602
        %612 = vmatmul.bf16.gmra.mxu0 %v599
        %v613 = vpop.f32.mrf.mxu0
        %v614 = vadd.f32 0.0, %v613
        %v615 = vpop.f32.mrf.mxu0
        %616 = vdwg.mxu0
        %v617 = vmul.f32 %v590, 0.35355338
        %v618 = vmul.f32 %v614, 0.35355338
        %v619 = vsel %vm573, %v617, -inf
        %620 = vmax.xlane.f32.xlu0 %v619
        %v621 = vpop.xlane.xlu0 %620
        %v622 = vsel %vm573, %v618, -inf
        %623 = vmax.xlane.f32.xlu0 %v622
        %v624 = vpop.xlane.xlu0 %623
        %v625 = vsub.f32 %v617, %v621
        %v626 = vsub.f32 %v618, %v624
        %v627 = vmul.f32 %v625, 1.442695
        %v628 = vpow.pop %v627
        %v629 = vmul.f32 %v626, 1.442695
        %v630 = vpow.pop %v629
        %v631 = vsel %vm573, %v628, 0.0
        %632 = vadd.xlane.f32.xlu0 %v631
        %v633 = vpop.xlane.xlu0 %632
        %v634 = vsel %vm573, %v630, 0.0
        %635 = vadd.xlane.f32.xlu0 %v634
        %v636 = vpop.xlane.xlu0 %635
        %v637 = vrcp.pop %v633
        %v638 = vrcp.pop %v636
        %v639 = vmul.f32 %v628, %v637
        %v640 = vmul.f32 %v630, %v638
        %v641 = vpack.c.bf16 %v639, %v639
        %v642 = vpack.c.bf16 %v640, %v640
        %643 = vrot.lane.b32.xlu0 %v570, 64
        %v644 = vpop.permute.xlu0 %643
        %v646 = vsel %vm573, %v641, 0
        %vm648 = vcmask 1043456
        %v650 = vsel %vm648, %v644, 0
        %652 = vmatpush.bf16.msra.mxu0 0
        %653 = vmatpush.bf16.msra.mxu0 0
        %654 = vmatpush.bf16.msra.mxu0 0
        %655 = vmatpush.bf16.msra.mxu0 0
        %656 = vmatpush.bf16.msra.mxu0 0
        %657 = vmatpush.bf16.msra.mxu0 0
        %658 = vmatpush.bf16.msra.mxu0 0
        %659 = vmatpush.bf16.msra.mxu0 %v650
        %660 = vmatmul.bf16.gmra.mxu0 %v646
        %v661 = vpop.f32.mrf.mxu0
        %v662 = vadd.f32 0.0, %v661
        %v663 = vpop.f32.mrf.mxu0
        %664 = vdwg.mxu0
        %665 = vrot.lane.b32.xlu0 %v595, 64
        %v666 = vpop.permute.xlu0 %665
        %v668 = vsel %vm573, %v642, 0
        %v671 = vsel %vm648, %v666, 0
        %673 = vmatpush.bf16.msra.mxu0 0
        %674 = vmatpush.bf16.msra.mxu0 0
        %675 = vmatpush.bf16.msra.mxu0 0
        %676 = vmatpush.bf16.msra.mxu0 0
        %677 = vmatpush.bf16.msra.mxu0 0
        %678 = vmatpush.bf16.msra.mxu0 0
        %679 = vmatpush.bf16.msra.mxu0 0
        %680 = vmatpush.bf16.msra.mxu0 %v671
        %681 = vmatmul.bf16.gmra.mxu0 %v668
        %v682 = vpop.f32.mrf.mxu0
        %v683 = vadd.f32 0.0, %v682
        %v684 = vpop.f32.mrf.mxu0
        %685 = vdwg.mxu0
        %v686 = vpack.c.bf16 %v683, %v662
        %687 = vrot.lane.b32.xlu0 %v570, 120
        %v688 = vpop.permute.xlu0 %687
        %689 = vrot.lane.b32.xlu0 %v570, 88
        %v690 = vpop.permute.xlu0 %689
        %v692 = vsel %vm573, %v688, 0
        %v695 = vsel %vm573, %v690, 0
        %697 = vmatpush.bf16.xpose.msra.mxu0 0
        %698 = vmatpush.bf16.xpose.msra.mxu0 0
        %699 = vmatpush.bf16.xpose.msra.mxu0 0
        %700 = vmatpush.bf16.xpose.msra.mxu0 0
        %701 = vmatpush.bf16.xpose.msra.mxu0 0
        %702 = vmatpush.bf16.xpose.msra.mxu0 0
        %703 = vmatpush.bf16.xpose.msra.mxu0 0
        %704 = vmatpush.bf16.xpose.msra.mxu0 %v695
        %705 = vmatmul.bf16.gmra.mxu0 %v692
        %v706 = vpop.f32.mrf.mxu0
        %v707 = vadd.f32 0.0, %v706
        %v708 = vpop.f32.mrf.mxu0
        %709 = vdwg.mxu0
        %710 = vrot.lane.b32.xlu0 %v595, 120
        %v711 = vpop.permute.xlu0 %710
        %712 = vrot.lane.b32.xlu0 %v595, 88
        %v713 = vpop.permute.xlu0 %712
        %v715 = vsel %vm573, %v711, 0
        %v718 = vsel %vm573, %v713, 0
        %720 = vmatpush.bf16.xpose.msra.mxu0 0
        %721 = vmatpush.bf16.xpose.msra.mxu0 0
        %722 = vmatpush.bf16.xpose.msra.mxu0 0
        %723 = vmatpush.bf16.xpose.msra.mxu0 0
        %724 = vmatpush.bf16.xpose.msra.mxu0 0
        %725 = vmatpush.bf16.xpose.msra.mxu0 0
        %726 = vmatpush.bf16.xpose.msra.mxu0 0
        %727 = vmatpush.bf16.xpose.msra.mxu0 %v718
        %728 = vmatmul.bf16.gmra.mxu0 %v715
        %v729 = vpop.f32.mrf.mxu0
        %v730 = vadd.f32 0.0, %v729
        %v731 = vpop.f32.mrf.mxu0
        %732 = vdwg.mxu0
        %v733 = vmul.f32 %v707, 0.35355338
        %v734 = vmul.f32 %v730, 0.35355338
        %v735 = vsel %vm573, %v733, -inf
        %736 = vmax.xlane.f32.xlu0 %v735
        %v737 = vpop.xlane.xlu0 %736
        %v738 = vsel %vm573, %v734, -inf
        %739 = vmax.xlane.f32.xlu0 %v738
        %v740 = vpop.xlane.xlu0 %739
        %v741 = vsub.f32 %v733, %v737
        %v742 = vsub.f32 %v734, %v740
        %v743 = vmul.f32 %v741, 1.442695
        %v744 = vpow.pop %v743
        %v745 = vmul.f32 %v742, 1.442695
        %v746 = vpow.pop %v745
        %v747 = vsel %vm573, %v744, 0.0
        %748 = vadd.xlane.f32.xlu0 %v747
        %v749 = vpop.xlane.xlu0 %748
        %v750 = vsel %vm573, %v746, 0.0
        %751 = vadd.xlane.f32.xlu0 %v750
        %v752 = vpop.xlane.xlu0 %751
        %v753 = vrcp.pop %v749
        %v754 = vrcp.pop %v752
        %v755 = vmul.f32 %v744, %v753
        %v756 = vmul.f32 %v746, %v754
        %v757 = vpack.c.bf16 %v755, %v755
        %v758 = vpack.c.bf16 %v756, %v756
        %759 = vrot.lane.b32.xlu0 %v570, 56
        %v760 = vpop.permute.xlu0 %759
        %v762 = vsel %vm573, %v757, 0
        %v765 = vsel %vm648, %v760, 0
        %767 = vmatpush.bf16.msra.mxu0 0
        %768 = vmatpush.bf16.msra.mxu0 0
        %769 = vmatpush.bf16.msra.mxu0 0
        %770 = vmatpush.bf16.msra.mxu0 0
        %771 = vmatpush.bf16.msra.mxu0 0
        %772 = vmatpush.bf16.msra.mxu0 0
        %773 = vmatpush.bf16.msra.mxu0 0
        %774 = vmatpush.bf16.msra.mxu0 %v765
        %775 = vmatmul.bf16.gmra.mxu0 %v762
        %v776 = vpop.f32.mrf.mxu0
        %v777 = vadd.f32 0.0, %v776
        %v778 = vpop.f32.mrf.mxu0
        %779 = vdwg.mxu0
        %780 = vrot.lane.b32.xlu0 %v595, 56
        %v781 = vpop.permute.xlu0 %780
        %v783 = vsel %vm573, %v758, 0
        %v786 = vsel %vm648, %v781, 0
        %788 = vmatpush.bf16.msra.mxu0 0
        %789 = vmatpush.bf16.msra.mxu0 0
        %790 = vmatpush.bf16.msra.mxu0 0
        %791 = vmatpush.bf16.msra.mxu0 0
        %792 = vmatpush.bf16.msra.mxu0 0
        %793 = vmatpush.bf16.msra.mxu0 0
        %794 = vmatpush.bf16.msra.mxu0 0
        %795 = vmatpush.bf16.msra.mxu0 %v786
        %796 = vmatmul.bf16.gmra.mxu0 %v783
        %v797 = vpop.f32.mrf.mxu0
        %v798 = vadd.f32 0.0, %v797
        %v799 = vpop.f32.mrf.mxu0
        %800 = vdwg.mxu0
        %v801 = vpack.c.bf16 %v798, %v777
        %v803 = vsel %vm573, %v801, 0
        %v806 = vsel %vm648, %v563, 0
        %808 = vmatpush.bf16.msra.mxu0 0
        %809 = vmatpush.bf16.msra.mxu0 0
        %810 = vmatpush.bf16.msra.mxu0 0
        %811 = vmatpush.bf16.msra.mxu0 0
        %812 = vmatpush.bf16.msra.mxu0 0
        %813 = vmatpush.bf16.msra.mxu0 0
        %814 = vmatpush.bf16.msra.mxu0 0
        %815 = vmatpush.bf16.msra.mxu0 %v806
        %816 = vmatmul.bf16.gmra.mxu0 %v803
        %v817 = vpop.f32.mrf.mxu0
        %v818 = vadd.f32 0.0, %v817
        %v819 = vpop.f32.mrf.mxu0
        %v820 = vadd.f32 0.0, %v819
        %821 = vdwg.mxu0
        %v823 = vsel %vm573, %v686, 0
        %v826 = vsel %vm648, %v562, 0
        %828 = vmatpush.bf16.msra.mxu0 0
        %829 = vmatpush.bf16.msra.mxu0 0
        %830 = vmatpush.bf16.msra.mxu0 0
        %831 = vmatpush.bf16.msra.mxu0 0
        %832 = vmatpush.bf16.msra.mxu0 0
        %833 = vmatpush.bf16.msra.mxu0 0
        %834 = vmatpush.bf16.msra.mxu0 0
        %835 = vmatpush.bf16.msra.mxu0 %v826
        %836 = vmatmul.bf16.gmra.mxu0 %v823
        %v837 = vpop.f32.mrf.mxu0
        %v838 = vadd.f32 %v818, %v837
        %v839 = vpop.f32.mrf.mxu0
        %v840 = vadd.f32 %v820, %v839
        %841 = vdwg.mxu0
        %842 = vrot.lane.b32.xlu0 %v570, 112
        %v843 = vpop.permute.xlu0 %842
        %844 = vrot.lane.b32.xlu0 %v570, 80
        %v845 = vpop.permute.xlu0 %844
        %v847 = vsel %vm573, %v843, 0
        %v850 = vsel %vm573, %v845, 0
        %852 = vmatpush.bf16.xpose.msra.mxu0 0
        %853 = vmatpush.bf16.xpose.msra.mxu0 0
        %854 = vmatpush.bf16.xpose.msra.mxu0 0
        %855 = vmatpush.bf16.xpose.msra.mxu0 0
        %856 = vmatpush.bf16.xpose.msra.mxu0 0
        %857 = vmatpush.bf16.xpose.msra.mxu0 0
        %858 = vmatpush.bf16.xpose.msra.mxu0 0
        %859 = vmatpush.bf16.xpose.msra.mxu0 %v850
        %860 = vmatmul.bf16.gmra.mxu0 %v847
        %v861 = vpop.f32.mrf.mxu0
        %v862 = vadd.f32 0.0, %v861
        %v863 = vpop.f32.mrf.mxu0
        %864 = vdwg.mxu0
        %865 = vrot.lane.b32.xlu0 %v595, 112
        %v866 = vpop.permute.xlu0 %865
        %867 = vrot.lane.b32.xlu0 %v595, 80
        %v868 = vpop.permute.xlu0 %867
        %v870 = vsel %vm573, %v866, 0
        %v873 = vsel %vm573, %v868, 0
        %875 = vmatpush.bf16.xpose.msra.mxu0 0
        %876 = vmatpush.bf16.xpose.msra.mxu0 0
        %877 = vmatpush.bf16.xpose.msra.mxu0 0
        %878 = vmatpush.bf16.xpose.msra.mxu0 0
        %879 = vmatpush.bf16.xpose.msra.mxu0 0
        %880 = vmatpush.bf16.xpose.msra.mxu0 0
        %881 = vmatpush.bf16.xpose.msra.mxu0 0
        %882 = vmatpush.bf16.xpose.msra.mxu0 %v873
        %883 = vmatmul.bf16.gmra.mxu0 %v870
        %v884 = vpop.f32.mrf.mxu0
        %v885 = vadd.f32 0.0, %v884
        %v886 = vpop.f32.mrf.mxu0
        %887 = vdwg.mxu0
        %v888 = vmul.f32 %v862, 0.35355338
        %v889 = vmul.f32 %v885, 0.35355338
        %v890 = vsel %vm573, %v888, -inf
        %891 = vmax.xlane.f32.xlu0 %v890
        %v892 = vpop.xlane.xlu0 %891
        %v893 = vsel %vm573, %v889, -inf
        %894 = vmax.xlane.f32.xlu0 %v893
        %v895 = vpop.xlane.xlu0 %894
        %v896 = vsub.f32 %v888, %v892
        %v897 = vsub.f32 %v889, %v895
        %v898 = vmul.f32 %v896, 1.442695
        %v899 = vpow.pop %v898
        %v900 = vmul.f32 %v897, 1.442695
        %v901 = vpow.pop %v900
        %v902 = vsel %vm573, %v899, 0.0
        %903 = vadd.xlane.f32.xlu0 %v902
        %v904 = vpop.xlane.xlu0 %903
        %v905 = vsel %vm573, %v901, 0.0
        %906 = vadd.xlane.f32.xlu0 %v905
        %v907 = vpop.xlane.xlu0 %906
        %v908 = vrcp.pop %v904
        %v909 = vrcp.pop %v907
        %v910 = vmul.f32 %v899, %v908
        %v911 = vmul.f32 %v901, %v909
        %v912 = vpack.c.bf16 %v910, %v910
        %v913 = vpack.c.bf16 %v911, %v911
        %914 = vrot.lane.b32.xlu0 %v570, 48
        %v915 = vpop.permute.xlu0 %914
        %v917 = vsel %vm573, %v912, 0
        %v920 = vsel %vm648, %v915, 0
        %922 = vmatpush.bf16.msra.mxu0 0
        %923 = vmatpush.bf16.msra.mxu0 0
        %924 = vmatpush.bf16.msra.mxu0 0
        %925 = vmatpush.bf16.msra.mxu0 0
        %926 = vmatpush.bf16.msra.mxu0 0
        %927 = vmatpush.bf16.msra.mxu0 0
        %928 = vmatpush.bf16.msra.mxu0 0
        %929 = vmatpush.bf16.msra.mxu0 %v920
        %930 = vmatmul.bf16.gmra.mxu0 %v917
        %v931 = vpop.f32.mrf.mxu0
        %v932 = vadd.f32 0.0, %v931
        %v933 = vpop.f32.mrf.mxu0
        %934 = vdwg.mxu0
        %935 = vrot.lane.b32.xlu0 %v595, 48
        %v936 = vpop.permute.xlu0 %935
        %v938 = vsel %vm573, %v913, 0
        %v941 = vsel %vm648, %v936, 0
        %943 = vmatpush.bf16.msra.mxu0 0
        %944 = vmatpush.bf16.msra.mxu0 0
        %945 = vmatpush.bf16.msra.mxu0 0
        %946 = vmatpush.bf16.msra.mxu0 0
        %947 = vmatpush.bf16.msra.mxu0 0
        %948 = vmatpush.bf16.msra.mxu0 0
        %949 = vmatpush.bf16.msra.mxu0 0
        %950 = vmatpush.bf16.msra.mxu0 %v941
        %951 = vmatmul.bf16.gmra.mxu0 %v938
        %v952 = vpop.f32.mrf.mxu0
        %v953 = vadd.f32 0.0, %v952
        %v954 = vpop.f32.mrf.mxu0
        %955 = vdwg.mxu0
        %v956 = vpack.c.bf16 %v953, %v932
        %v958 = vsel %vm573, %v956, 0
        %v961 = vsel %vm648, %v564, 0
        %963 = vmatpush.bf16.msra.mxu0 0
        %964 = vmatpush.bf16.msra.mxu0 0
        %965 = vmatpush.bf16.msra.mxu0 0
        %966 = vmatpush.bf16.msra.mxu0 0
        %967 = vmatpush.bf16.msra.mxu0 0
        %968 = vmatpush.bf16.msra.mxu0 0
        %969 = vmatpush.bf16.msra.mxu0 0
        %970 = vmatpush.bf16.msra.mxu0 %v961
        %971 = vmatmul.bf16.gmra.mxu0 %v958
        %v972 = vpop.f32.mrf.mxu0
        %v973 = vadd.f32 0.0, %v972
        %v974 = vpop.f32.mrf.mxu0
        %v975 = vadd.f32 0.0, %v974
        %976 = vdwg.mxu0
        %v977 = vadd.f32 %v838, %v973
        %v978 = vadd.f32 %v840, %v975
        %979 = vrot.lane.b32.xlu0 %v570, 104
        %v980 = vpop.permute.xlu0 %979
        %981 = vrot.lane.b32.xlu0 %v570, 72
        %v982 = vpop.permute.xlu0 %981
        %v984 = vsel %vm573, %v980, 0
        %v987 = vsel %vm573, %v982, 0
        %989 = vmatpush.bf16.xpose.msra.mxu0 0
        %990 = vmatpush.bf16.xpose.msra.mxu0 0
        %991 = vmatpush.bf16.xpose.msra.mxu0 0
        %992 = vmatpush.bf16.xpose.msra.mxu0 0
        %993 = vmatpush.bf16.xpose.msra.mxu0 0
        %994 = vmatpush.bf16.xpose.msra.mxu0 0
        %995 = vmatpush.bf16.xpose.msra.mxu0 0
        %996 = vmatpush.bf16.xpose.msra.mxu0 %v987
        %997 = vmatmul.bf16.gmra.mxu0 %v984
        %v998 = vpop.f32.mrf.mxu0
        %v999 = vadd.f32 0.0, %v998
        %v1000 = vpop.f32.mrf.mxu0
        %1001 = vdwg.mxu0
        %1002 = vrot.lane.b32.xlu0 %v595, 104
        %v1003 = vpop.permute.xlu0 %1002
        %1004 = vrot.lane.b32.xlu0 %v595, 72
        %v1005 = vpop.permute.xlu0 %1004
        %v1007 = vsel %vm573, %v1003, 0
        %v1010 = vsel %vm573, %v1005, 0
        %1012 = vmatpush.bf16.xpose.msra.mxu0 0
        %1013 = vmatpush.bf16.xpose.msra.mxu0 0
        %1014 = vmatpush.bf16.xpose.msra.mxu0 0
        %1015 = vmatpush.bf16.xpose.msra.mxu0 0
        %1016 = vmatpush.bf16.xpose.msra.mxu0 0
        %1017 = vmatpush.bf16.xpose.msra.mxu0 0
        %1018 = vmatpush.bf16.xpose.msra.mxu0 0
        %1019 = vmatpush.bf16.xpose.msra.mxu0 %v1010
        %1020 = vmatmul.bf16.gmra.mxu0 %v1007
        %v1021 = vpop.f32.mrf.mxu0
        %v1022 = vadd.f32 0.0, %v1021
        %v1023 = vpop.f32.mrf.mxu0
        %1024 = vdwg.mxu0
        %v1025 = vmul.f32 %v999, 0.35355338
        %v1026 = vmul.f32 %v1022, 0.35355338
        %v1027 = vsel %vm573, %v1025, -inf
        %1028 = vmax.xlane.f32.xlu0 %v1027
        %v1029 = vpop.xlane.xlu0 %1028
        %v1030 = vsel %vm573, %v1026, -inf
        %1031 = vmax.xlane.f32.xlu0 %v1030
        %v1032 = vpop.xlane.xlu0 %1031
        %v1033 = vsub.f32 %v1025, %v1029
        %v1034 = vsub.f32 %v1026, %v1032
        %v1035 = vmul.f32 %v1033, 1.442695
        %v1036 = vpow.pop %v1035
        %v1037 = vmul.f32 %v1034, 1.442695
        %v1038 = vpow.pop %v1037
        %v1039 = vsel %vm573, %v1036, 0.0
        %1040 = vadd.xlane.f32.xlu0 %v1039
        %v1041 = vpop.xlane.xlu0 %1040
        %v1042 = vsel %vm573, %v1038, 0.0
        %1043 = vadd.xlane.f32.xlu0 %v1042
        %v1044 = vpop.xlane.xlu0 %1043
        %v1045 = vrcp.pop %v1041
        %v1046 = vrcp.pop %v1044
        %v1047 = vmul.f32 %v1036, %v1045
        %v1048 = vmul.f32 %v1038, %v1046
        %v1049 = vpack.c.bf16 %v1047, %v1047
        %v1050 = vpack.c.bf16 %v1048, %v1048
        %1051 = vrot.lane.b32.xlu0 %v570, 40
        %v1052 = vpop.permute.xlu0 %1051
        %v1054 = vsel %vm573, %v1049, 0
        %v1057 = vsel %vm648, %v1052, 0
        %1059 = vmatpush.bf16.msra.mxu0 0
        %1060 = vmatpush.bf16.msra.mxu0 0
        %1061 = vmatpush.bf16.msra.mxu0 0
        %1062 = vmatpush.bf16.msra.mxu0 0
        %1063 = vmatpush.bf16.msra.mxu0 0
        %1064 = vmatpush.bf16.msra.mxu0 0
        %1065 = vmatpush.bf16.msra.mxu0 0
        %1066 = vmatpush.bf16.msra.mxu0 %v1057
        %1067 = vmatmul.bf16.gmra.mxu0 %v1054
        %v1068 = vpop.f32.mrf.mxu0
        %v1069 = vadd.f32 0.0, %v1068
        %v1070 = vpop.f32.mrf.mxu0
        %1071 = vdwg.mxu0
        %1072 = vrot.lane.b32.xlu0 %v595, 40
        %v1073 = vpop.permute.xlu0 %1072
        %v1075 = vsel %vm573, %v1050, 0
        %v1078 = vsel %vm648, %v1073, 0
        %1080 = vmatpush.bf16.msra.mxu0 0
        %1081 = vmatpush.bf16.msra.mxu0 0
        %1082 = vmatpush.bf16.msra.mxu0 0
        %1083 = vmatpush.bf16.msra.mxu0 0
        %1084 = vmatpush.bf16.msra.mxu0 0
        %1085 = vmatpush.bf16.msra.mxu0 0
        %1086 = vmatpush.bf16.msra.mxu0 0
        %1087 = vmatpush.bf16.msra.mxu0 %v1078
        %1088 = vmatmul.bf16.gmra.mxu0 %v1075
        %v1089 = vpop.f32.mrf.mxu0
        %v1090 = vadd.f32 0.0, %v1089
        %v1091 = vpop.f32.mrf.mxu0
        %1092 = vdwg.mxu0
        %v1093 = vpack.c.bf16 %v1090, %v1069
        %v1095 = vsel %vm573, %v1093, 0
        %v1098 = vsel %vm648, %v565, 0
        %1100 = vmatpush.bf16.msra.mxu0 0
        %1101 = vmatpush.bf16.msra.mxu0 0
        %1102 = vmatpush.bf16.msra.mxu0 0
        %1103 = vmatpush.bf16.msra.mxu0 0
        %1104 = vmatpush.bf16.msra.mxu0 0
        %1105 = vmatpush.bf16.msra.mxu0 0
        %1106 = vmatpush.bf16.msra.mxu0 0
        %1107 = vmatpush.bf16.msra.mxu0 %v1098
        %1108 = vmatmul.bf16.gmra.mxu0 %v1095
        %v1109 = vpop.f32.mrf.mxu0
        %v1110 = vadd.f32 0.0, %v1109
        %v1111 = vpop.f32.mrf.mxu0
        %v1112 = vadd.f32 0.0, %v1111
        %1113 = vdwg.mxu0
        %v1114 = vadd.f32 %v977, %v1110
        %v1115 = vadd.f32 %v978, %v1112
        %v1116 = vld [vmem:[%s6] sm:$0x1]
        %v1118 = vperm.slane %v1116, 0
        %v1120 = vadd.f32 %v1114, %v1118
        %v1121 = vadd.f32 %v1115, %v1118
        %v1122 = vadd.f32 %v458, %v1120
        %v1123 = vadd.f32 %v459, %v1121
        %v1124 = vld [vmem:[%s7] sm:$0x1]
        %v1125 = vld [vmem:[%s8] sm:$0x1]
        %v1126 = vsel %vm462, %v1122, 0.0
        %1127 = vadd.xlane.f32.xlu0 %v1126
        %v1128 = vpop.xlane.xlu0 %1127
        %v1129 = vsel %vm462, %v1123, 0.0
        %1130 = vadd.xlane.f32.xlu0 %v1129
        %v1131 = vpop.xlane.xlu0 %1130
        %v1132 = vmul.f32 %v1128, %v475
        %v1133 = vmul.f32 %v1131, %v475
        %v1134 = vsub.f32 %v1122, %v1132
        %v1135 = vsub.f32 %v1123, %v1133
        %v1136 = vmul.f32 %v1134, %v1134
        %v1137 = vmul.f32 %v1135, %v1135
        %v1138 = vsel %vm462, %v1136, 0.0
        %1139 = vadd.xlane.f32.xlu0 %v1138
        %v1140 = vpop.xlane.xlu0 %1139
        %v1141 = vsel %vm462, %v1137, 0.0
        %1142 = vadd.xlane.f32.xlu0 %v1141
        %v1143 = vpop.xlane.xlu0 %1142
        %v1144 = vmul.f32 %v1140, %v475
        %v1145 = vmul.f32 %v1143, %v475
        %v1146 = vadd.f32 %v1144, 1e-05
        %v1147 = vadd.f32 %v1145, 1e-05
        %v1148 = vrsqrt.pop %v1146
        %v1149 = vmul.f32 %v1148, %v1146
        %v1150 = vmul.f32 %v1149, %v1148
        %v1151 = vmul.f32 0.5, %v1150
        %v1152 = vsub.f32 1.5, %v1151
        %v1153 = vmul.f32 %v1148, %v1152
        %vm1154 = vweird.f32 %v1146
        %vm1155 = vweird.f32 %v1148
        %vm1156 = vmor %vm1154, %vm1155
        %v1157 = vsel %vm1156, %v1148, %v1153
        %v1158 = vrsqrt.pop %v1147
        %v1159 = vmul.f32 %v1158, %v1147
        %v1160 = vmul.f32 %v1159, %v1158
        %v1161 = vmul.f32 0.5, %v1160
        %v1162 = vsub.f32 1.5, %v1161
        %v1163 = vmul.f32 %v1158, %v1162
        %vm1164 = vweird.f32 %v1147
        %vm1165 = vweird.f32 %v1158
        %vm1166 = vmor %vm1164, %vm1165
        %v1167 = vsel %vm1166, %v1158, %v1163
        %v1168 = vmul.f32 %v1134, %v1157
        %v1169 = vmul.f32 %v1135, %v1167
        %v1171 = vperm.slane %v1124, 0
        %v1173 = vmul.f32 %v1168, %v1171
        %v1174 = vmul.f32 %v1169, %v1171
        %v1176 = vperm.slane %v1125, 0
        %v1178 = vadd.f32 %v1173, %v1176
        %v1179 = vadd.f32 %v1174, %v1176
        %v1180 = vpack.c.bf16 %v1179, %v1178
        %v1181 = vld [vmem:[%s9] sm:$0xf]
        %v1182 = vld [vmem:[%s9 + $0x4] sm:$0xf]
        %v1183 = vld [vmem:[%s9 + $0x8] sm:$0xf]
        %v1184 = vld [vmem:[%s9 + $0xc] sm:$0xf]
        %v1185 = vld [vmem:[%s10] sm:$0x1]
        %v1187 = vperm.slane %v1185, 0
        %v1193 = vunpack.c.l.b16 %v1181
        %v1194 = vunpack.c.l.b16 %v1182
        %v1195 = vunpack.c.l.b16 %v1183
        %v1196 = vunpack.c.l.b16 %v1184
        %v1197 = vpack.c.b16 %v1194, %v1193
        %v1198 = vpack.c.b16 %v1196, %v1195
        %v1202 = vsel %vm462, %v1180, 0
        %1204 = vmatpush.bf16.msra.mxu0 0
        %1205 = vmatpush.bf16.msra.mxu0 0
        %1206 = vmatpush.bf16.msra.mxu0 0
        %1207 = vmatpush.bf16.msra.mxu0 0
        %1208 = vmatpush.bf16.msra.mxu0 0
        %1209 = vmatpush.bf16.msra.mxu0 0
        %1210 = vmatpush.bf16.msra.mxu0 %v1198
        %1211 = vmatpush.bf16.msra.mxu0 %v1197
        %1212 = vmatmul.bf16.gmra.mxu0 %v1202
        %v1213 = vpop.f32.mrf.mxu0
        %v1214 = vadd.f32 %v1187, %v1213
        %v1215 = vpop.f32.mrf.mxu0
        %v1216 = vadd.f32 %v1187, %v1215
        %1217 = vdwg.mxu0
        %v1218 = vmul.f32 %v1214, 0.5
        %v1219 = vmul.f32 %v1216, 0.5
        %v1220 = vmul.f32 %v1214, 0.70710677
        %v1221 = vmul.f32 %v1216, 0.70710677
        %v1222 = vmul.f32 %v1220, %v1220
        %v1223 = vmin.f32 16.0, %v1222
        %v1224 = vmul.f32 %v1223, 2.1237322e-06
        %v1225 = vadd.f32 %v1224, 0.00028619796
        %v1226 = vmul.f32 %v1223, %v1225
        %v1227 = vadd.f32 %v1226, 0.0036580483
        %v1228 = vmul.f32 %v1223, %v1227
        %v1229 = vadd.f32 %v1228, 0.05243302
        %v1230 = vmul.f32 %v1223, %v1229
        %v1231 = vadd.f32 %v1230, 0.18741608
        %v1232 = vmul.f32 %v1223, %v1231
        %v1233 = vadd.f32 %v1232, 1.1283791
        %v1234 = vmul.f32 %v1220, %v1233
        %v1235 = vmul.f32 %v1223, 3.8918573e-05
        %v1236 = vadd.f32 %v1235, 0.001143296
        %v1237 = vmul.f32 %v1223, %v1236
        %v1238 = vadd.f32 %v1237, 0.014752088
        %v1239 = vmul.f32 %v1223, %v1238
        %v1240 = vadd.f32 %v1239, 0.112945676
        %v1241 = vmul.f32 %v1223, %v1240
        %v1242 = vadd.f32 %v1241, 0.4994258
        %v1243 = vmul.f32 %v1223, %v1242
        %v1244 = vadd.f32 %v1243, 1.0
        %v1245 = vrcp.pop %v1244
        %v1246 = vmul.f32 %v1244, %v1245
        %v1247 = vsub.f32 1.0, %v1246
        %v1248 = vmul.f32 %v1245, %v1247
        %v1249 = vadd.f32 %v1245, %v1248
        %vm1250 = vweird.f32 %v1244
        %vm1251 = vweird.f32 %v1245
        %vm1252 = vmor %vm1250, %vm1251
        %v1253 = vsel %vm1252, %v1245, %v1249
        %v1254 = vand.u32 2147483647, %v1244
        %vm1255 = vcmp.eq.f32.partialorder %v1254, 8.507059e+37
        %v1256 = vand.u32 %v1244, 2147483648
        %v1257 = vor.u32 1.1754944e-38, %v1256
        %v1258 = vsel %vm1255, %v1257, %v1253
        %v1259 = vmul.f32 %v1234, %v1258
        %v1260 = vmin.f32 %v1259, 1.0
        %v1261 = vmax.f32 %v1260, -1.0
        %v1262 = vmul.f32 %v1221, %v1221
        %v1263 = vmin.f32 16.0, %v1262
        %v1264 = vmul.f32 %v1263, 2.1237322e-06
        %v1265 = vadd.f32 %v1264, 0.00028619796
        %v1266 = vmul.f32 %v1263, %v1265
        %v1267 = vadd.f32 %v1266, 0.0036580483
        %v1268 = vmul.f32 %v1263, %v1267
        %v1269 = vadd.f32 %v1268, 0.05243302
        %v1270 = vmul.f32 %v1263, %v1269
        %v1271 = vadd.f32 %v1270, 0.18741608
        %v1272 = vmul.f32 %v1263, %v1271
        %v1273 = vadd.f32 %v1272, 1.1283791
        %v1274 = vmul.f32 %v1221, %v1273
        %v1275 = vmul.f32 %v1263, 3.8918573e-05
        %v1276 = vadd.f32 %v1275, 0.001143296
        %v1277 = vmul.f32 %v1263, %v1276
        %v1278 = vadd.f32 %v1277, 0.014752088
        %v1279 = vmul.f32 %v1263, %v1278
        %v1280 = vadd.f32 %v1279, 0.112945676
        %v1281 = vmul.f32 %v1263, %v1280
        %v1282 = vadd.f32 %v1281, 0.4994258
        %v1283 = vmul.f32 %v1263, %v1282
        %v1284 = vadd.f32 %v1283, 1.0
        %v1285 = vrcp.pop %v1284
        %v1286 = vmul.f32 %v1284, %v1285
        %v1287 = vsub.f32 1.0, %v1286
        %v1288 = vmul.f32 %v1285, %v1287
        %v1289 = vadd.f32 %v1285, %v1288
        %vm1290 = vweird.f32 %v1284
        %vm1291 = vweird.f32 %v1285
        %vm1292 = vmor %vm1290, %vm1291
        %v1293 = vsel %vm1292, %v1285, %v1289
        %v1294 = vand.u32 2147483647, %v1284
        %vm1295 = vcmp.eq.f32.partialorder %v1294, 8.507059e+37
        %v1296 = vand.u32 %v1284, 2147483648
        %v1297 = vor.u32 1.1754944e-38, %v1296
        %v1298 = vsel %vm1295, %v1297, %v1293
        %v1299 = vmul.f32 %v1274, %v1298
        %v1300 = vmin.f32 %v1299, 1.0
        %v1301 = vmax.f32 %v1300, -1.0
        %v1302 = vadd.f32 %v1261, 1.0
        %v1303 = vadd.f32 %v1301, 1.0
        %v1304 = vmul.f32 %v1218, %v1302
        %v1305 = vmul.f32 %v1219, %v1303
        %v1306 = vpack.c.bf16 %v1305, %v1304
        %v1307 = vld [vmem:[%s11] sm:$0xf]
        %v1308 = vld [vmem:[%s11 + $0x4] sm:$0xf]
        %v1309 = vld [vmem:[%s11 + $0x8] sm:$0xf]
        %v1310 = vld [vmem:[%s11 + $0xc] sm:$0xf]
        %v1311 = vld [vmem:[%s11 + $0x10] sm:$0xf]
        %v1312 = vld [vmem:[%s11 + $0x14] sm:$0xf]
        %v1313 = vld [vmem:[%s11 + $0x18] sm:$0xf]
        %v1314 = vld [vmem:[%s11 + $0x1c] sm:$0xf]
        %v1315 = vld [vmem:[%s11 + $0x20] sm:$0xf]
        %v1316 = vld [vmem:[%s11 + $0x24] sm:$0xf]
        %v1317 = vld [vmem:[%s11 + $0x28] sm:$0xf]
        %v1318 = vld [vmem:[%s11 + $0x2c] sm:$0xf]
        %v1319 = vld [vmem:[%s11 + $0x30] sm:$0xf]
        %v1320 = vld [vmem:[%s11 + $0x34] sm:$0xf]
        %v1321 = vld [vmem:[%s11 + $0x38] sm:$0xf]
        %v1322 = vld [vmem:[%s11 + $0x3c] sm:$0xf]
        %v1323 = vld [vmem:[%s12] sm:$0x1]
        %v1325 = vperm.slane %v1323, 0
        %v1343 = vunpack.c.l.b16 %v1307
        %v1344 = vunpack.c.l.b16 %v1308
        %v1345 = vunpack.c.l.b16 %v1309
        %v1346 = vunpack.c.l.b16 %v1310
        %v1347 = vunpack.c.l.b16 %v1311
        %v1348 = vunpack.c.l.b16 %v1312
        %v1349 = vunpack.c.l.b16 %v1313
        %v1350 = vunpack.c.l.b16 %v1314
        %v1351 = vunpack.c.l.b16 %v1315
        %v1352 = vunpack.c.l.b16 %v1316
        %v1353 = vunpack.c.l.b16 %v1317
        %v1354 = vunpack.c.l.b16 %v1318
        %v1355 = vunpack.c.l.b16 %v1319
        %v1356 = vunpack.c.l.b16 %v1320
        %v1357 = vunpack.c.l.b16 %v1321
        %v1358 = vunpack.c.l.b16 %v1322
        %v1359 = vpack.c.b16 %v1344, %v1343
        %v1360 = vpack.c.b16 %v1346, %v1345
        %v1361 = vpack.c.b16 %v1348, %v1347
        %v1362 = vpack.c.b16 %v1350, %v1349
        %v1363 = vpack.c.b16 %v1352, %v1351
        %v1364 = vpack.c.b16 %v1354, %v1353
        %v1365 = vpack.c.b16 %v1356, %v1355
        %v1366 = vpack.c.b16 %v1358, %v1357
        %1375 = vmatpush.bf16.msra.mxu0 %v1366
        %1376 = vmatpush.bf16.msra.mxu0 %v1365
        %1377 = vmatpush.bf16.msra.mxu0 %v1364
        %1378 = vmatpush.bf16.msra.mxu0 %v1363
        %1379 = vmatpush.bf16.msra.mxu0 %v1362
        %1380 = vmatpush.bf16.msra.mxu0 %v1361
        %1381 = vmatpush.bf16.msra.mxu0 %v1360
        %1382 = vmatpush.bf16.msra.mxu0 %v1359
        %1383 = vmatmul.bf16.gmra.mxu0 %v1306
        %v1384 = vpop.f32.mrf.mxu0
        %v1385 = vadd.f32 %v1325, %v1384
        %v1386 = vpop.f32.mrf.mxu0
        %v1387 = vadd.f32 %v1325, %v1386
        %1388 = vdwg.mxu0
        %v1389 = vadd.f32 %v1122, %v1385
        %v1390 = vadd.f32 %v1123, %v1387
        %1391 = vst.msk [vmem:[%s449] sm:$0xff] %vm462, %v1389
        %1392 = vst.msk [vmem:[%s449 + $0x8] sm:$0xff] %vm462, %v1390
        %s1393 = sand.u32 %s314, 1
        %s1394 = scalar_lea.sflag [#allocation4], %s1393
        %s1395 = sand.u32 %s314, 1
        %s1396 = smul.addr %s1395, 16
        %s1397 = scalar_lea.vmem [#allocation5], %s1396
        // Predicated region
        $region77: #{tpu_custom_call.1} parent=71 // pred_check
          %p1398 = pneg %p324
        $region78: #{tpu_custom_call.1} parent=71 // pred_check_branch
          %1400 = sbr.rel (%p1398) target = $region80
        $region79: #{tpu_custom_call.1} parent=71 // pred_region
          %s1401 = smul.u32 2, %s28
          %1403 = vsyncadd %s1394, 0
          %s1404 = smul.addr %s1401, 8
          %s1405 = scalar_lea.hbm %s13, %s1404
          %s1406 = sshll.u32 %s1397, 4
          %s1407 = int_to_ptr.vmem [resolvable:$true] %s1406
          %s1408 = sshll.u32 %s1405, 4
          %s1409 = int_to_ptr.hbm [resolvable:$true] %s1408
          %1414 = dma.vmem_to_hbm [thread:$0]  %s1407, 256, %s1409, %s1394, 128, 128, 8
        $region80: #{tpu_custom_call.1} parent=71 // pred_fallthru
          _
      $region72: #{tpu_custom_call.1} parent=5 // pred_fallthru
        _
      %p1415 = scmp.le.s32.totalorder 2, %s23
      // Predicated region
      $region81: #{tpu_custom_call.1} parent=5 // pred_check
        %p1416 = pneg %p1415
      $region82: #{tpu_custom_call.1} parent=5 // pred_check_branch
        %1418 = sbr.rel (%p1416) target = $region84
      $region83: #{tpu_custom_call.1} parent=5 // pred_region
        %s1419 = ssub.s32 %s23, 2
        // Predicated region
        $region85: #{tpu_custom_call.1} parent=83 // pred_check
          %p1420 = pneg %p330
        $region86: #{tpu_custom_call.1} parent=83 // pred_check_branch
          %1422 = sbr.rel (%p1420) target = $region88
        $region87: #{tpu_custom_call.1} parent=83 // pred_region
          %s1423 = sand.u32 %s315, 1
          %s1424 = scalar_lea.sflag [#allocation4], %s1423
          %s1425 = sand.u32 %s315, 1
          %s1426 = smul.addr %s1425, 16
          %s1427 = scalar_lea.vmem [#allocation5], %s1426
          %1429 = dma.done %s1424, 256
        $region88: #{tpu_custom_call.1} parent=83 // pred_fallthru
          _
      $region84: #{tpu_custom_call.1} parent=5 // pred_fallthru
        _
    $region6: #{tpu_custom_call.1} parent=1 // loop_footer
      %s27 = sadd.s32 1, %s23
    $region7: #{tpu_custom_call.1} parent=1 // loop_footer_branch
      %22 = sbr.rel target = $region3
    $region8: #{tpu_custom_call.1} parent=1 // loop_exit
      _
    %1430 = vsyncpa [#allocation3], 1
    %s1431 = scalar_lea.sflag [#allocation3], 1
    %1432 = vsyncpa %s1431, 1
    %1433 = vsyncpa [#allocation4], 1
    %s1434 = scalar_lea.sflag [#allocation4], 1
    %1435 = vsyncpa %s1434, 1

</llo_original>
